<compile_context>
chip_gen: v5e
topology: v5e:2x2
jax: 0.10.0
libtpu: 0.0.40
codegen_flags: <defaults>
</compile_context>

<pallas_src>
import functools

import jax
import jax.numpy as jnp
from jax.experimental import pallas as pl
from jax.experimental.pallas import tpu as pltpu


def _mlp_attention_kernel(q_ref, m_ref, mT_ref, wqT_ref, bq_ref, wm_ref, v_ref,
                          out_ref, attn_ref, mpT_ref, *, tanh_dtype):
    Bt, tq, Dq = q_ref.shape
    _, Lm, Dm = m_ref.shape
    H = wm_ref.shape[0]

    # Memory projection mp^T = Wm @ memory^T  -> (H, Lm), Lm on lanes.
    # Computed once per batch-block (q-tile axis is the inner, sequential axis)
    # and cached in VMEM scratch.
    @pl.when(pl.program_id(1) == 0)
    def _():
        for b in range(Bt):
            mpT_ref[b] = jnp.dot(wm_ref[...], mT_ref[b],
                                 preferred_element_type=jnp.float32)

    # Query projection: one batch-packed MXU matmul (Bt*tq, Dq) x (Dq, H).
    q2d = q_ref[...].reshape(Bt * tq, Dq)
    qp = jnp.dot(q2d, wqT_ref[...], preferred_element_type=jnp.float32)
    qp = (qp + bq_ref[...]).reshape(Bt, tq, H)              # (Bt, tq, H)

    # Additive (Bahdanau) scores, accumulated per hidden unit with Lm on the
    # lane axis.  Per-step temporary is only (Bt, tq, Lm); the (Lq, Lm, H)
    # hidden tensor of the naive formulation is never materialized.
    acc = jnp.zeros((Bt, tq, Lm), dtype=jnp.float32)
    for h in range(H):                                      # static, unrolled
        q_col = qp[:, :, h:h + 1]                           # (Bt, tq, 1)
        m_row = mpT_ref[:, h:h + 1, :]                      # (Bt, 1, Lm)
        t = jnp.tanh((q_col + m_row).astype(tanh_dtype))    # (Bt, tq, Lm)
        acc = acc + v_ref[0, h] * t.astype(jnp.float32)

    # Softmax over the memory length (last / lane axis).
    mx = jnp.max(acc, axis=-1, keepdims=True)
    e = jnp.exp(acc - mx)
    denom = jnp.sum(e, axis=-1, keepdims=True)
    # approx=True would push this onto the EUP approx path; kept exact here so
    # the result matches the f32 reference tightly.
    w = e * pl.reciprocal(denom, approx=False)              # (Bt, tq, Lm)

    attn_ref[...] = w.astype(attn_ref.dtype)
    # weighted_memory = weights @ memory  (batched MXU matmul).
    out_ref[...] = jnp.einsum(
        'bql,bld->bqd', w.astype(m_ref.dtype), m_ref[...],
        preferred_element_type=jnp.float32).astype(out_ref.dtype)


def mlp_attention(query, memory, wq, bq, wm, v, *,
                  block_b=None, block_q=None, tanh_dtype=jnp.float32):
    """MLP (additive) attention.

    query:  (B, Lq, Dq)        memory: (B, Lm, Dm)
    wq: (H, Dq)  linear_query.weight      bq: (H,)  linear_query.bias
    wm: (H, Dm)  linear_memory.weight     v:  (1, H) v.weight
    Returns (weighted_memory (B, Lq, Dm), weights (B, Lq, Lm)).
    """
    B, Lq, Dq = query.shape
    _, Lm, Dm = memory.shape
    H = wq.shape[0]

    block_b = block_b or (2 if B % 2 == 0 else 1)
    block_q = block_q or Lq
    assert B % block_b == 0 and Lq % block_q == 0, "demo requires exact tiling"
    assert block_q % 8 == 0 or block_q == Lq

    # Wrapper-side glue (plain XLA): weight transpose, memory transpose so the
    # kernel's memory projection is a straight MXU matmul with Lm on lanes.
    wq_t = wq.T                                   # (Dq, H)
    bq2 = bq.reshape(1, H)
    memory_t = jnp.swapaxes(memory, 1, 2)         # (B, Dm, Lm)

    grid = (B // block_b, Lq // block_q)
    kernel = functools.partial(_mlp_attention_kernel, tanh_dtype=tanh_dtype)

    out_shapes = (
        jax.ShapeDtypeStruct((B, Lq, Dm), jnp.float32),   # weighted_memory
        jax.ShapeDtypeStruct((B, Lq, Lm), jnp.float32),   # attention weights
    )

    return pl.pallas_call(
        kernel,
        out_shape=out_shapes,
        grid_spec=pltpu.PrefetchScalarGridSpec(
            num_scalar_prefetch=0,
            grid=grid,
            in_specs=[
                pl.BlockSpec((block_b, block_q, Dq), lambda i, j: (i, j, 0)),
                pl.BlockSpec((block_b, Lm, Dm), lambda i, j: (i, 0, 0)),
                pl.BlockSpec((block_b, Dm, Lm), lambda i, j: (i, 0, 0)),
                pl.BlockSpec((Dq, H), lambda i, j: (0, 0)),     # Wq^T
                pl.BlockSpec((1, H), lambda i, j: (0, 0)),      # bq
                pl.BlockSpec((H, Dm), lambda i, j: (0, 0)),     # Wm
                pl.BlockSpec((1, H), lambda i, j: (0, 0),       # v (scalars)
                             memory_space=pltpu.MemorySpace.SMEM),
            ],
            out_specs=[
                pl.BlockSpec((block_b, block_q, Dm), lambda i, j: (i, j, 0)),
                pl.BlockSpec((block_b, block_q, Lm), lambda i, j: (i, j, 0)),
            ],
            scratch_shapes=[pltpu.VMEM((block_b, H, Lm), jnp.float32)],
        ),
        compiler_params=pltpu.CompilerParams(
            dimension_semantics=("parallel", "arbitrary")),
    )(query, memory, memory_t, wq_t, bq2, wm, v)


def reference_mlp_attention(query, memory, wq, bq, wm, v):
    """Pure-JAX reference matching the PyTorch forward (PyTorch weight layout:
       wq: (H, Dq), wm: (H, Dm), v: (1, H))."""
    qp = jnp.einsum('bqd,hd->bqh', query, wq) + bq            # Linear(q)
    mp = jnp.einsum('bmd,hd->bmh', memory, wm)                # Linear(m)
    hidden = qp[:, :, None, :] + mp[:, None, :, :]
    key = jnp.tanh(hidden)
    attn = jnp.einsum('bqmh,oh->bqmo', key, v)[..., 0]
    weights = jax.nn.softmax(attn, axis=-1)
    weighted_memory = jnp.einsum('bqm,bmd->bqd', weights, memory)
    return weighted_memory, weights


if __name__ == "__main__":
    # Small shapes consistent with the module; Lm = 128 keeps the weights
    # output lane-dense and B=4 with block_b=2 gives a 2-step parallel axis.
    B, Lq, Lm = 4, 16, 128
    query_size = 32
    memory_size = 32
    hidden_size = 32

    key = jax.random.PRNGKey(0)
    k_q, k_m, k_wq, k_bq, k_wm, k_v = jax.random.split(key, 6)

    query = jax.random.normal(k_q, (B, Lq, query_size), dtype=jnp.float32)
    memory = jax.random.normal(k_m, (B, Lm, memory_size), dtype=jnp.float32)

    # Deterministic parameter init (PyTorch nn.Linear layout: (out, in)).
    def uinit(k, shape, fan_in):
        bound = 1.0 / (fan_in ** 0.5)
        return jax.random.uniform(k, shape, jnp.float32, -bound, bound)

    wq = uinit(k_wq, (hidden_size, query_size), query_size)    # linear_query.weight
    bq = uinit(k_bq, (hidden_size,), query_size)               # linear_query.bias
    wm = uinit(k_wm, (hidden_size, memory_size), memory_size)  # linear_memory.weight
    v = uinit(k_v, (1, hidden_size), hidden_size)              # v.weight

    weighted_memory, weights = mlp_attention(
        query, memory, wq, bq, wm, v, block_b=2, block_q=Lq,
        tanh_dtype=jnp.float32)  # use jnp.bfloat16 on v6e/v7x for ~2x EUP tanh
    jax.block_until_ready(weighted_memory)
    jax.block_until_ready(weights)

    ref_wm, ref_w = reference_mlp_attention(query, memory, wq, bq, wm, v)

    assert jnp.allclose(weighted_memory, ref_wm, atol=1e-4, rtol=1e-4), \
        "weighted_memory mismatch"
    assert jnp.allclose(weights, ref_w, atol=1e-4, rtol=1e-4), \
        "attention weights mismatch"

    print("KERNEL_OK")
</pallas_src>

<mosaic_0001>
module attributes {stable_mosaic.version = 11 : i64} {
  func.func @_mlp_attention_kernel(%arg0: i32, %arg1: i32, %arg2: memref<2x16x32xf32, #tpu.memory_space<vmem>>, %arg3: memref<2x128x32xf32, #tpu.memory_space<vmem>>, %arg4: memref<2x32x128xf32, #tpu.memory_space<vmem>>, %arg5: memref<32x32xf32, #tpu.memory_space<vmem>>, %arg6: memref<1x32xf32, #tpu.memory_space<vmem>>, %arg7: memref<32x32xf32, #tpu.memory_space<vmem>>, %arg8: memref<1x32xf32, #tpu.memory_space<smem>>, %arg9: memref<2x16x32xf32, #tpu.memory_space<vmem>>, %arg10: memref<2x16x128xf32, #tpu.memory_space<vmem>>, %arg11: memref<2x32x128xf32, #tpu.memory_space<vmem>>) attributes {dimension_semantics = [#tpu.dimension_semantics<parallel>, #tpu.dimension_semantics<arbitrary>], iteration_bounds = array<i64: 2, 1>, scalar_prefetch = 0 : i64, scratch_operands = 1 : i64, tpu.core_type = #tpu.core_type<tc>, window_params = [{transform_indices = @transform_0, window_bounds = array<i64: 2, 16, 32>}, {transform_indices = @transform_1, window_bounds = array<i64: 2, 128, 32>}, {transform_indices = @transform_2, window_bounds = array<i64: 2, 32, 128>}, {pipeline_mode = #tpu.pipeline_mode<synchronous>, transform_indices = @transform_3, window_bounds = array<i64: 32, 32>}, {pipeline_mode = #tpu.pipeline_mode<synchronous>, transform_indices = @transform_4, window_bounds = array<i64: 1, 32>}, {pipeline_mode = #tpu.pipeline_mode<synchronous>, transform_indices = @transform_5, window_bounds = array<i64: 32, 32>}, {transform_indices = @transform_6, window_bounds = array<i64: 1, 32>}, {transform_indices = @transform_7, window_bounds = array<i64: 2, 16, 32>}, {transform_indices = @transform_8, window_bounds = array<i64: 2, 16, 128>}]} {
    %c0_i32 = arith.constant 0 : i32
    %0 = arith.cmpi eq, %arg1, %c0_i32 : i32
    %1 = arith.extui %0 : i1 to i32
    %c0_i32_0 = arith.constant 0 : i32
    %2 = arith.cmpi ne, %1, %c0_i32_0 : i32
    scf.if %2 {
      %c0_149 = arith.constant 0 : index
      %c0_150 = arith.constant 0 : index
      %346 = vector.load %arg7[%c0_149, %c0_150] : memref<32x32xf32, #tpu.memory_space<vmem>>, vector<32x32xf32>
      %c0_151 = arith.constant 0 : index
      %c0_152 = arith.constant 0 : index
      %c0_153 = arith.constant 0 : index
      %347 = vector.load %arg4[%c0_151, %c0_152, %c0_153] : memref<2x32x128xf32, #tpu.memory_space<vmem>>, vector<1x32x128xf32>
      %348 = vector.shape_cast %347 : vector<1x32x128xf32> to vector<32x128xf32>
      %cst_154 = arith.constant dense<0.000000e+00> : vector<32x128xf32>
      %349 = tpu.matmul %346, %348, %cst_154 {dimension_numbers = #tpu.dot_dimension_numbers<[1], [0], [0], [1], [0, 0, 1, 1], [], []>} : vector<32x32xf32>, vector<32x128xf32>, vector<32x128xf32> -> vector<32x128xf32>
      %c0_155 = arith.constant 0 : index
      %c0_156 = arith.constant 0 : index
      %c0_157 = arith.constant 0 : index
      %350 = vector.load %arg11[%c0_155, %c0_156, %c0_157] : memref<2x32x128xf32, #tpu.memory_space<vmem>>, vector<1x32x128xf32>
      %351 = vector.shape_cast %350 : vector<1x32x128xf32> to vector<32x128xf32>
      %352 = vector.shape_cast %349 : vector<32x128xf32> to vector<1x32x128xf32>
      tpu.vector_store %arg11[%c0_155, %c0_156, %c0_157], %352 {strides = array<i32>} : memref<2x32x128xf32, #tpu.memory_space<vmem>>, vector<1x32x128xf32>,
      %c0_158 = arith.constant 0 : index
      %c0_159 = arith.constant 0 : index
      %353 = vector.load %arg7[%c0_158, %c0_159] : memref<32x32xf32, #tpu.memory_space<vmem>>, vector<32x32xf32>
      %c1_160 = arith.constant 1 : index
      %c0_161 = arith.constant 0 : index
      %c0_162 = arith.constant 0 : index
      %354 = vector.load %arg4[%c1_160, %c0_161, %c0_162] : memref<2x32x128xf32, #tpu.memory_space<vmem>>, vector<1x32x128xf32>
      %355 = vector.shape_cast %354 : vector<1x32x128xf32> to vector<32x128xf32>
      %cst_163 = arith.constant dense<0.000000e+00> : vector<32x128xf32>
      %356 = tpu.matmul %353, %355, %cst_163 {dimension_numbers = #tpu.dot_dimension_numbers<[1], [0], [0], [1], [0, 0, 1, 1], [], []>} : vector<32x32xf32>, vector<32x128xf32>, vector<32x128xf32> -> vector<32x128xf32>
      %c1_164 = arith.constant 1 : index
      %c0_165 = arith.constant 0 : index
      %c0_166 = arith.constant 0 : index
      %357 = vector.load %arg11[%c1_164, %c0_165, %c0_166] : memref<2x32x128xf32, #tpu.memory_space<vmem>>, vector<1x32x128xf32>
      %358 = vector.shape_cast %357 : vector<1x32x128xf32> to vector<32x128xf32>
      %359 = vector.shape_cast %356 : vector<32x128xf32> to vector<1x32x128xf32>
      tpu.vector_store %arg11[%c1_164, %c0_165, %c0_166], %359 {strides = array<i32>} : memref<2x32x128xf32, #tpu.memory_space<vmem>>, vector<1x32x128xf32>,
    } else {
    }
    %c0 = arith.constant 0 : index
    %c0_1 = arith.constant 0 : index
    %c0_2 = arith.constant 0 : index
    %3 = vector.load %arg2[%c0, %c0_1, %c0_2] : memref<2x16x32xf32, #tpu.memory_space<vmem>>, vector<2x16x32xf32>
    %4 = vector.shape_cast %3 : vector<2x16x32xf32> to vector<32x32xf32>
    %c0_3 = arith.constant 0 : index
    %c0_4 = arith.constant 0 : index
    %5 = vector.load %arg5[%c0_3, %c0_4] : memref<32x32xf32, #tpu.memory_space<vmem>>, vector<32x32xf32>
    %cst = arith.constant dense<0.000000e+00> : vector<32x32xf32>
    %6 = tpu.matmul %4, %5, %cst {dimension_numbers = #tpu.dot_dimension_numbers<[1], [0], [0], [1], [0, 0, 1, 1], [], []>} : vector<32x32xf32>, vector<32x32xf32>, vector<32x32xf32> -> vector<32x32xf32>
    %c0_5 = arith.constant 0 : index
    %c0_6 = arith.constant 0 : index
    %7 = vector.load %arg6[%c0_5, %c0_6] : memref<1x32xf32, #tpu.memory_space<vmem>>, vector<1x32xf32>
    %8 = vector.broadcast %7 : vector<1x32xf32> to vector<32x32xf32>
    %9 = arith.addf %6, %8 : vector<32x32xf32>
    %10 = vector.shape_cast %9 : vector<32x32xf32> to vector<2x16x32xf32>
    %cst_7 = arith.constant 0.000000e+00 : f32
    %11 = vector.broadcast %cst_7 : f32 to vector<2x16x128xf32>
    %12 = vector.extract_strided_slice %10 {offsets = [0, 0, 0], sizes = [2, 16, 1], strides = [1, 1, 1]} : vector<2x16x32xf32> to vector<2x16x1xf32>
    %c0_8 = arith.constant 0 : index
    %c0_9 = arith.constant 0 : index
    %c0_10 = arith.constant 0 : index
    %13 = vector.load %arg11[%c0_8, %c0_9, %c0_10] : memref<2x32x128xf32, #tpu.memory_space<vmem>>, vector<2x1x128xf32>
    %14 = vector.broadcast %12 : vector<2x16x1xf32> to vector<2x16x128xf32>
    %15 = vector.broadcast %13 : vector<2x1x128xf32> to vector<2x16x128xf32>
    %16 = arith.addf %14, %15 : vector<2x16x128xf32>
    %17 = math.tanh %16 : vector<2x16x128xf32>
    %c0_11 = arith.constant 0 : index
    %c0_12 = arith.constant 0 : index
    %18 = memref.load %arg8[%c0_11, %c0_12] : memref<1x32xf32, #tpu.memory_space<smem>>
    %19 = vector.broadcast %18 : f32 to vector<2x16x128xf32>
    %20 = arith.mulf %19, %17 : vector<2x16x128xf32>
    %21 = arith.addf %11, %20 : vector<2x16x128xf32>
    %22 = vector.extract_strided_slice %10 {offsets = [0, 0, 1], sizes = [2, 16, 1], strides = [1, 1, 1]} : vector<2x16x32xf32> to vector<2x16x1xf32>
    %c0_13 = arith.constant 0 : index
    %c1 = arith.constant 1 : index
    %c0_14 = arith.constant 0 : index
    %23 = vector.load %arg11[%c0_13, %c1, %c0_14] : memref<2x32x128xf32, #tpu.memory_space<vmem>>, vector<2x1x128xf32>
    %24 = vector.broadcast %22 : vector<2x16x1xf32> to vector<2x16x128xf32>
    %25 = vector.broadcast %23 : vector<2x1x128xf32> to vector<2x16x128xf32>
    %26 = arith.addf %24, %25 : vector<2x16x128xf32>
    %27 = math.tanh %26 : vector<2x16x128xf32>
    %c0_15 = arith.constant 0 : index
    %c1_16 = arith.constant 1 : index
    %28 = memref.load %arg8[%c0_15, %c1_16] : memref<1x32xf32, #tpu.memory_space<smem>>
    %29 = vector.broadcast %28 : f32 to vector<2x16x128xf32>
    %30 = arith.mulf %29, %27 : vector<2x16x128xf32>
    %31 = arith.addf %21, %30 : vector<2x16x128xf32>
    %32 = vector.extract_strided_slice %10 {offsets = [0, 0, 2], sizes = [2, 16, 1], strides = [1, 1, 1]} : vector<2x16x32xf32> to vector<2x16x1xf32>
    %c0_17 = arith.constant 0 : index
    %c2 = arith.constant 2 : index
    %c0_18 = arith.constant 0 : index
    %33 = vector.load %arg11[%c0_17, %c2, %c0_18] : memref<2x32x128xf32, #tpu.memory_space<vmem>>, vector<2x1x128xf32>
    %34 = vector.broadcast %32 : vector<2x16x1xf32> to vector<2x16x128xf32>
    %35 = vector.broadcast %33 : vector<2x1x128xf32> to vector<2x16x128xf32>
    %36 = arith.addf %34, %35 : vector<2x16x128xf32>
    %37 = math.tanh %36 : vector<2x16x128xf32>
    %c0_19 = arith.constant 0 : index
    %c2_20 = arith.constant 2 : index
    %38 = memref.load %arg8[%c0_19, %c2_20] : memref<1x32xf32, #tpu.memory_space<smem>>
    %39 = vector.broadcast %38 : f32 to vector<2x16x128xf32>
    %40 = arith.mulf %39, %37 : vector<2x16x128xf32>
    %41 = arith.addf %31, %40 : vector<2x16x128xf32>
    %42 = vector.extract_strided_slice %10 {offsets = [0, 0, 3], sizes = [2, 16, 1], strides = [1, 1, 1]} : vector<2x16x32xf32> to vector<2x16x1xf32>
    %c0_21 = arith.constant 0 : index
    %c3 = arith.constant 3 : index
    %c0_22 = arith.constant 0 : index
    %43 = vector.load %arg11[%c0_21, %c3, %c0_22] : memref<2x32x128xf32, #tpu.memory_space<vmem>>, vector<2x1x128xf32>
    %44 = vector.broadcast %42 : vector<2x16x1xf32> to vector<2x16x128xf32>
    %45 = vector.broadcast %43 : vector<2x1x128xf32> to vector<2x16x128xf32>
    %46 = arith.addf %44, %45 : vector<2x16x128xf32>
    %47 = math.tanh %46 : vector<2x16x128xf32>
    %c0_23 = arith.constant 0 : index
    %c3_24 = arith.constant 3 : index
    %48 = memref.load %arg8[%c0_23, %c3_24] : memref<1x32xf32, #tpu.memory_space<smem>>
    %49 = vector.broadcast %48 : f32 to vector<2x16x128xf32>
    %50 = arith.mulf %49, %47 : vector<2x16x128xf32>
    %51 = arith.addf %41, %50 : vector<2x16x128xf32>
    %52 = vector.extract_strided_slice %10 {offsets = [0, 0, 4], sizes = [2, 16, 1], strides = [1, 1, 1]} : vector<2x16x32xf32> to vector<2x16x1xf32>
    %c0_25 = arith.constant 0 : index
    %c4 = arith.constant 4 : index
    %c0_26 = arith.constant 0 : index
    %53 = vector.load %arg11[%c0_25, %c4, %c0_26] : memref<2x32x128xf32, #tpu.memory_space<vmem>>, vector<2x1x128xf32>
    %54 = vector.broadcast %52 : vector<2x16x1xf32> to vector<2x16x128xf32>
    %55 = vector.broadcast %53 : vector<2x1x128xf32> to vector<2x16x128xf32>
    %56 = arith.addf %54, %55 : vector<2x16x128xf32>
    %57 = math.tanh %56 : vector<2x16x128xf32>
    %c0_27 = arith.constant 0 : index
    %c4_28 = arith.constant 4 : index
    %58 = memref.load %arg8[%c0_27, %c4_28] : memref<1x32xf32, #tpu.memory_space<smem>>
    %59 = vector.broadcast %58 : f32 to vector<2x16x128xf32>
    %60 = arith.mulf %59, %57 : vector<2x16x128xf32>
    %61 = arith.addf %51, %60 : vector<2x16x128xf32>
    %62 = vector.extract_strided_slice %10 {offsets = [0, 0, 5], sizes = [2, 16, 1], strides = [1, 1, 1]} : vector<2x16x32xf32> to vector<2x16x1xf32>
    %c0_29 = arith.constant 0 : index
    %c5 = arith.constant 5 : index
    %c0_30 = arith.constant 0 : index
    %63 = vector.load %arg11[%c0_29, %c5, %c0_30] : memref<2x32x128xf32, #tpu.memory_space<vmem>>, vector<2x1x128xf32>
    %64 = vector.broadcast %62 : vector<2x16x1xf32> to vector<2x16x128xf32>
    %65 = vector.broadcast %63 : vector<2x1x128xf32> to vector<2x16x128xf32>
    %66 = arith.addf %64, %65 : vector<2x16x128xf32>
    %67 = math.tanh %66 : vector<2x16x128xf32>
    %c0_31 = arith.constant 0 : index
    %c5_32 = arith.constant 5 : index
    %68 = memref.load %arg8[%c0_31, %c5_32] : memref<1x32xf32, #tpu.memory_space<smem>>
    %69 = vector.broadcast %68 : f32 to vector<2x16x128xf32>
    %70 = arith.mulf %69, %67 : vector<2x16x128xf32>
    %71 = arith.addf %61, %70 : vector<2x16x128xf32>
    %72 = vector.extract_strided_slice %10 {offsets = [0, 0, 6], sizes = [2, 16, 1], strides = [1, 1, 1]} : vector<2x16x32xf32> to vector<2x16x1xf32>
    %c0_33 = arith.constant 0 : index
    %c6 = arith.constant 6 : index
    %c0_34 = arith.constant 0 : index
    %73 = vector.load %arg11[%c0_33, %c6, %c0_34] : memref<2x32x128xf32, #tpu.memory_space<vmem>>, vector<2x1x128xf32>
    %74 = vector.broadcast %72 : vector<2x16x1xf32> to vector<2x16x128xf32>
    %75 = vector.broadcast %73 : vector<2x1x128xf32> to vector<2x16x128xf32>
    %76 = arith.addf %74, %75 : vector<2x16x128xf32>
    %77 = math.tanh %76 : vector<2x16x128xf32>
    %c0_35 = arith.constant 0 : index
    %c6_36 = arith.constant 6 : index
    %78 = memref.load %arg8[%c0_35, %c6_36] : memref<1x32xf32, #tpu.memory_space<smem>>
    %79 = vector.broadcast %78 : f32 to vector<2x16x128xf32>
    %80 = arith.mulf %79, %77 : vector<2x16x128xf32>
    %81 = arith.addf %71, %80 : vector<2x16x128xf32>
    %82 = vector.extract_strided_slice %10 {offsets = [0, 0, 7], sizes = [2, 16, 1], strides = [1, 1, 1]} : vector<2x16x32xf32> to vector<2x16x1xf32>
    %c0_37 = arith.constant 0 : index
    %c7 = arith.constant 7 : index
    %c0_38 = arith.constant 0 : index
    %83 = vector.load %arg11[%c0_37, %c7, %c0_38] : memref<2x32x128xf32, #tpu.memory_space<vmem>>, vector<2x1x128xf32>
    %84 = vector.broadcast %82 : vector<2x16x1xf32> to vector<2x16x128xf32>
    %85 = vector.broadcast %83 : vector<2x1x128xf32> to vector<2x16x128xf32>
    %86 = arith.addf %84, %85 : vector<2x16x128xf32>
    %87 = math.tanh %86 : vector<2x16x128xf32>
    %c0_39 = arith.constant 0 : index
    %c7_40 = arith.constant 7 : index
    %88 = memref.load %arg8[%c0_39, %c7_40] : memref<1x32xf32, #tpu.memory_space<smem>>
    %89 = vector.broadcast %88 : f32 to vector<2x16x128xf32>
    %90 = arith.mulf %89, %87 : vector<2x16x128xf32>
    %91 = arith.addf %81, %90 : vector<2x16x128xf32>
    %92 = vector.extract_strided_slice %10 {offsets = [0, 0, 8], sizes = [2, 16, 1], strides = [1, 1, 1]} : vector<2x16x32xf32> to vector<2x16x1xf32>
    %c0_41 = arith.constant 0 : index
    %c8 = arith.constant 8 : index
    %c0_42 = arith.constant 0 : index
    %93 = vector.load %arg11[%c0_41, %c8, %c0_42] : memref<2x32x128xf32, #tpu.memory_space<vmem>>, vector<2x1x128xf32>
    %94 = vector.broadcast %92 : vector<2x16x1xf32> to vector<2x16x128xf32>
    %95 = vector.broadcast %93 : vector<2x1x128xf32> to vector<2x16x128xf32>
    %96 = arith.addf %94, %95 : vector<2x16x128xf32>
    %97 = math.tanh %96 : vector<2x16x128xf32>
    %c0_43 = arith.constant 0 : index
    %c8_44 = arith.constant 8 : index
    %98 = memref.load %arg8[%c0_43, %c8_44] : memref<1x32xf32, #tpu.memory_space<smem>>
    %99 = vector.broadcast %98 : f32 to vector<2x16x128xf32>
    %100 = arith.mulf %99, %97 : vector<2x16x128xf32>
    %101 = arith.addf %91, %100 : vector<2x16x128xf32>
    %102 = vector.extract_strided_slice %10 {offsets = [0, 0, 9], sizes = [2, 16, 1], strides = [1, 1, 1]} : vector<2x16x32xf32> to vector<2x16x1xf32>
    %c0_45 = arith.constant 0 : index
    %c9 = arith.constant 9 : index
    %c0_46 = arith.constant 0 : index
    %103 = vector.load %arg11[%c0_45, %c9, %c0_46] : memref<2x32x128xf32, #tpu.memory_space<vmem>>, vector<2x1x128xf32>
    %104 = vector.broadcast %102 : vector<2x16x1xf32> to vector<2x16x128xf32>
    %105 = vector.broadcast %103 : vector<2x1x128xf32> to vector<2x16x128xf32>
    %106 = arith.addf %104, %105 : vector<2x16x128xf32>
    %107 = math.tanh %106 : vector<2x16x128xf32>
    %c0_47 = arith.constant 0 : index
    %c9_48 = arith.constant 9 : index
    %108 = memref.load %arg8[%c0_47, %c9_48] : memref<1x32xf32, #tpu.memory_space<smem>>
    %109 = vector.broadcast %108 : f32 to vector<2x16x128xf32>
    %110 = arith.mulf %109, %107 : vector<2x16x128xf32>
    %111 = arith.addf %101, %110 : vector<2x16x128xf32>
    %112 = vector.extract_strided_slice %10 {offsets = [0, 0, 10], sizes = [2, 16, 1], strides = [1, 1, 1]} : vector<2x16x32xf32> to vector<2x16x1xf32>
    %c0_49 = arith.constant 0 : index
    %c10 = arith.constant 10 : index
    %c0_50 = arith.constant 0 : index
    %113 = vector.load %arg11[%c0_49, %c10, %c0_50] : memref<2x32x128xf32, #tpu.memory_space<vmem>>, vector<2x1x128xf32>
    %114 = vector.broadcast %112 : vector<2x16x1xf32> to vector<2x16x128xf32>
    %115 = vector.broadcast %113 : vector<2x1x128xf32> to vector<2x16x128xf32>
    %116 = arith.addf %114, %115 : vector<2x16x128xf32>
    %117 = math.tanh %116 : vector<2x16x128xf32>
    %c0_51 = arith.constant 0 : index
    %c10_52 = arith.constant 10 : index
    %118 = memref.load %arg8[%c0_51, %c10_52] : memref<1x32xf32, #tpu.memory_space<smem>>
    %119 = vector.broadcast %118 : f32 to vector<2x16x128xf32>
    %120 = arith.mulf %119, %117 : vector<2x16x128xf32>
    %121 = arith.addf %111, %120 : vector<2x16x128xf32>
    %122 = vector.extract_strided_slice %10 {offsets = [0, 0, 11], sizes = [2, 16, 1], strides = [1, 1, 1]} : vector<2x16x32xf32> to vector<2x16x1xf32>
    %c0_53 = arith.constant 0 : index
    %c11 = arith.constant 11 : index
    %c0_54 = arith.constant 0 : index
    %123 = vector.load %arg11[%c0_53, %c11, %c0_54] : memref<2x32x128xf32, #tpu.memory_space<vmem>>, vector<2x1x128xf32>
    %124 = vector.broadcast %122 : vector<2x16x1xf32> to vector<2x16x128xf32>
    %125 = vector.broadcast %123 : vector<2x1x128xf32> to vector<2x16x128xf32>
    %126 = arith.addf %124, %125 : vector<2x16x128xf32>
    %127 = math.tanh %126 : vector<2x16x128xf32>
    %c0_55 = arith.constant 0 : index
    %c11_56 = arith.constant 11 : index
    %128 = memref.load %arg8[%c0_55, %c11_56] : memref<1x32xf32, #tpu.memory_space<smem>>
    %129 = vector.broadcast %128 : f32 to vector<2x16x128xf32>
    %130 = arith.mulf %129, %127 : vector<2x16x128xf32>
    %131 = arith.addf %121, %130 : vector<2x16x128xf32>
    %132 = vector.extract_strided_slice %10 {offsets = [0, 0, 12], sizes = [2, 16, 1], strides = [1, 1, 1]} : vector<2x16x32xf32> to vector<2x16x1xf32>
    %c0_57 = arith.constant 0 : index
    %c12 = arith.constant 12 : index
    %c0_58 = arith.constant 0 : index
    %133 = vector.load %arg11[%c0_57, %c12, %c0_58] : memref<2x32x128xf32, #tpu.memory_space<vmem>>, vector<2x1x128xf32>
    %134 = vector.broadcast %132 : vector<2x16x1xf32> to vector<2x16x128xf32>
    %135 = vector.broadcast %133 : vector<2x1x128xf32> to vector<2x16x128xf32>
    %136 = arith.addf %134, %135 : vector<2x16x128xf32>
    %137 = math.tanh %136 : vector<2x16x128xf32>
    %c0_59 = arith.constant 0 : index
    %c12_60 = arith.constant 12 : index
    %138 = memref.load %arg8[%c0_59, %c12_60] : memref<1x32xf32, #tpu.memory_space<smem>>
    %139 = vector.broadcast %138 : f32 to vector<2x16x128xf32>
    %140 = arith.mulf %139, %137 : vector<2x16x128xf32>
    %141 = arith.addf %131, %140 : vector<2x16x128xf32>
    %142 = vector.extract_strided_slice %10 {offsets = [0, 0, 13], sizes = [2, 16, 1], strides = [1, 1, 1]} : vector<2x16x32xf32> to vector<2x16x1xf32>
    %c0_61 = arith.constant 0 : index
    %c13 = arith.constant 13 : index
    %c0_62 = arith.constant 0 : index
    %143 = vector.load %arg11[%c0_61, %c13, %c0_62] : memref<2x32x128xf32, #tpu.memory_space<vmem>>, vector<2x1x128xf32>
    %144 = vector.broadcast %142 : vector<2x16x1xf32> to vector<2x16x128xf32>
    %145 = vector.broadcast %143 : vector<2x1x128xf32> to vector<2x16x128xf32>
    %146 = arith.addf %144, %145 : vector<2x16x128xf32>
    %147 = math.tanh %146 : vector<2x16x128xf32>
    %c0_63 = arith.constant 0 : index
    %c13_64 = arith.constant 13 : index
    %148 = memref.load %arg8[%c0_63, %c13_64] : memref<1x32xf32, #tpu.memory_space<smem>>
    %149 = vector.broadcast %148 : f32 to vector<2x16x128xf32>
    %150 = arith.mulf %149, %147 : vector<2x16x128xf32>
    %151 = arith.addf %141, %150 : vector<2x16x128xf32>
    %152 = vector.extract_strided_slice %10 {offsets = [0, 0, 14], sizes = [2, 16, 1], strides = [1, 1, 1]} : vector<2x16x32xf32> to vector<2x16x1xf32>
    %c0_65 = arith.constant 0 : index
    %c14 = arith.constant 14 : index
    %c0_66 = arith.constant 0 : index
    %153 = vector.load %arg11[%c0_65, %c14, %c0_66] : memref<2x32x128xf32, #tpu.memory_space<vmem>>, vector<2x1x128xf32>
    %154 = vector.broadcast %152 : vector<2x16x1xf32> to vector<2x16x128xf32>
    %155 = vector.broadcast %153 : vector<2x1x128xf32> to vector<2x16x128xf32>
    %156 = arith.addf %154, %155 : vector<2x16x128xf32>
    %157 = math.tanh %156 : vector<2x16x128xf32>
    %c0_67 = arith.constant 0 : index
    %c14_68 = arith.constant 14 : index
    %158 = memref.load %arg8[%c0_67, %c14_68] : memref<1x32xf32, #tpu.memory_space<smem>>
    %159 = vector.broadcast %158 : f32 to vector<2x16x128xf32>
    %160 = arith.mulf %159, %157 : vector<2x16x128xf32>
    %161 = arith.addf %151, %160 : vector<2x16x128xf32>
    %162 = vector.extract_strided_slice %10 {offsets = [0, 0, 15], sizes = [2, 16, 1], strides = [1, 1, 1]} : vector<2x16x32xf32> to vector<2x16x1xf32>
    %c0_69 = arith.constant 0 : index
    %c15 = arith.constant 15 : index
    %c0_70 = arith.constant 0 : index
    %163 = vector.load %arg11[%c0_69, %c15, %c0_70] : memref<2x32x128xf32, #tpu.memory_space<vmem>>, vector<2x1x128xf32>
    %164 = vector.broadcast %162 : vector<2x16x1xf32> to vector<2x16x128xf32>
    %165 = vector.broadcast %163 : vector<2x1x128xf32> to vector<2x16x128xf32>
    %166 = arith.addf %164, %165 : vector<2x16x128xf32>
    %167 = math.tanh %166 : vector<2x16x128xf32>
    %c0_71 = arith.constant 0 : index
    %c15_72 = arith.constant 15 : index
    %168 = memref.load %arg8[%c0_71, %c15_72] : memref<1x32xf32, #tpu.memory_space<smem>>
    %169 = vector.broadcast %168 : f32 to vector<2x16x128xf32>
    %170 = arith.mulf %169, %167 : vector<2x16x128xf32>
    %171 = arith.addf %161, %170 : vector<2x16x128xf32>
    %172 = vector.extract_strided_slice %10 {offsets = [0, 0, 16], sizes = [2, 16, 1], strides = [1, 1, 1]} : vector<2x16x32xf32> to vector<2x16x1xf32>
    %c0_73 = arith.constant 0 : index
    %c16 = arith.constant 16 : index
    %c0_74 = arith.constant 0 : index
    %173 = vector.load %arg11[%c0_73, %c16, %c0_74] : memref<2x32x128xf32, #tpu.memory_space<vmem>>, vector<2x1x128xf32>
    %174 = vector.broadcast %172 : vector<2x16x1xf32> to vector<2x16x128xf32>
    %175 = vector.broadcast %173 : vector<2x1x128xf32> to vector<2x16x128xf32>
    %176 = arith.addf %174, %175 : vector<2x16x128xf32>
    %177 = math.tanh %176 : vector<2x16x128xf32>
    %c0_75 = arith.constant 0 : index
    %c16_76 = arith.constant 16 : index
    %178 = memref.load %arg8[%c0_75, %c16_76] : memref<1x32xf32, #tpu.memory_space<smem>>
    %179 = vector.broadcast %178 : f32 to vector<2x16x128xf32>
    %180 = arith.mulf %179, %177 : vector<2x16x128xf32>
    %181 = arith.addf %171, %180 : vector<2x16x128xf32>
    %182 = vector.extract_strided_slice %10 {offsets = [0, 0, 17], sizes = [2, 16, 1], strides = [1, 1, 1]} : vector<2x16x32xf32> to vector<2x16x1xf32>
    %c0_77 = arith.constant 0 : index
    %c17 = arith.constant 17 : index
    %c0_78 = arith.constant 0 : index
    %183 = vector.load %arg11[%c0_77, %c17, %c0_78] : memref<2x32x128xf32, #tpu.memory_space<vmem>>, vector<2x1x128xf32>
    %184 = vector.broadcast %182 : vector<2x16x1xf32> to vector<2x16x128xf32>
    %185 = vector.broadcast %183 : vector<2x1x128xf32> to vector<2x16x128xf32>
    %186 = arith.addf %184, %185 : vector<2x16x128xf32>
    %187 = math.tanh %186 : vector<2x16x128xf32>
    %c0_79 = arith.constant 0 : index
    %c17_80 = arith.constant 17 : index
    %188 = memref.load %arg8[%c0_79, %c17_80] : memref<1x32xf32, #tpu.memory_space<smem>>
    %189 = vector.broadcast %188 : f32 to vector<2x16x128xf32>
    %190 = arith.mulf %189, %187 : vector<2x16x128xf32>
    %191 = arith.addf %181, %190 : vector<2x16x128xf32>
    %192 = vector.extract_strided_slice %10 {offsets = [0, 0, 18], sizes = [2, 16, 1], strides = [1, 1, 1]} : vector<2x16x32xf32> to vector<2x16x1xf32>
    %c0_81 = arith.constant 0 : index
    %c18 = arith.constant 18 : index
    %c0_82 = arith.constant 0 : index
    %193 = vector.load %arg11[%c0_81, %c18, %c0_82] : memref<2x32x128xf32, #tpu.memory_space<vmem>>, vector<2x1x128xf32>
    %194 = vector.broadcast %192 : vector<2x16x1xf32> to vector<2x16x128xf32>
    %195 = vector.broadcast %193 : vector<2x1x128xf32> to vector<2x16x128xf32>
    %196 = arith.addf %194, %195 : vector<2x16x128xf32>
    %197 = math.tanh %196 : vector<2x16x128xf32>
    %c0_83 = arith.constant 0 : index
    %c18_84 = arith.constant 18 : index
    %198 = memref.load %arg8[%c0_83, %c18_84] : memref<1x32xf32, #tpu.memory_space<smem>>
    %199 = vector.broadcast %198 : f32 to vector<2x16x128xf32>
    %200 = arith.mulf %199, %197 : vector<2x16x128xf32>
    %201 = arith.addf %191, %200 : vector<2x16x128xf32>
    %202 = vector.extract_strided_slice %10 {offsets = [0, 0, 19], sizes = [2, 16, 1], strides = [1, 1, 1]} : vector<2x16x32xf32> to vector<2x16x1xf32>
    %c0_85 = arith.constant 0 : index
    %c19 = arith.constant 19 : index
    %c0_86 = arith.constant 0 : index
    %203 = vector.load %arg11[%c0_85, %c19, %c0_86] : memref<2x32x128xf32, #tpu.memory_space<vmem>>, vector<2x1x128xf32>
    %204 = vector.broadcast %202 : vector<2x16x1xf32> to vector<2x16x128xf32>
    %205 = vector.broadcast %203 : vector<2x1x128xf32> to vector<2x16x128xf32>
    %206 = arith.addf %204, %205 : vector<2x16x128xf32>
    %207 = math.tanh %206 : vector<2x16x128xf32>
    %c0_87 = arith.constant 0 : index
    %c19_88 = arith.constant 19 : index
    %208 = memref.load %arg8[%c0_87, %c19_88] : memref<1x32xf32, #tpu.memory_space<smem>>
    %209 = vector.broadcast %208 : f32 to vector<2x16x128xf32>
    %210 = arith.mulf %209, %207 : vector<2x16x128xf32>
    %211 = arith.addf %201, %210 : vector<2x16x128xf32>
    %212 = vector.extract_strided_slice %10 {offsets = [0, 0, 20], sizes = [2, 16, 1], strides = [1, 1, 1]} : vector<2x16x32xf32> to vector<2x16x1xf32>
    %c0_89 = arith.constant 0 : index
    %c20 = arith.constant 20 : index
    %c0_90 = arith.constant 0 : index
    %213 = vector.load %arg11[%c0_89, %c20, %c0_90] : memref<2x32x128xf32, #tpu.memory_space<vmem>>, vector<2x1x128xf32>
    %214 = vector.broadcast %212 : vector<2x16x1xf32> to vector<2x16x128xf32>
    %215 = vector.broadcast %213 : vector<2x1x128xf32> to vector<2x16x128xf32>
    %216 = arith.addf %214, %215 : vector<2x16x128xf32>
    %217 = math.tanh %216 : vector<2x16x128xf32>
    %c0_91 = arith.constant 0 : index
    %c20_92 = arith.constant 20 : index
    %218 = memref.load %arg8[%c0_91, %c20_92] : memref<1x32xf32, #tpu.memory_space<smem>>
    %219 = vector.broadcast %218 : f32 to vector<2x16x128xf32>
    %220 = arith.mulf %219, %217 : vector<2x16x128xf32>
    %221 = arith.addf %211, %220 : vector<2x16x128xf32>
    %222 = vector.extract_strided_slice %10 {offsets = [0, 0, 21], sizes = [2, 16, 1], strides = [1, 1, 1]} : vector<2x16x32xf32> to vector<2x16x1xf32>
    %c0_93 = arith.constant 0 : index
    %c21 = arith.constant 21 : index
    %c0_94 = arith.constant 0 : index
    %223 = vector.load %arg11[%c0_93, %c21, %c0_94] : memref<2x32x128xf32, #tpu.memory_space<vmem>>, vector<2x1x128xf32>
    %224 = vector.broadcast %222 : vector<2x16x1xf32> to vector<2x16x128xf32>
    %225 = vector.broadcast %223 : vector<2x1x128xf32> to vector<2x16x128xf32>
    %226 = arith.addf %224, %225 : vector<2x16x128xf32>
    %227 = math.tanh %226 : vector<2x16x128xf32>
    %c0_95 = arith.constant 0 : index
    %c21_96 = arith.constant 21 : index
    %228 = memref.load %arg8[%c0_95, %c21_96] : memref<1x32xf32, #tpu.memory_space<smem>>
    %229 = vector.broadcast %228 : f32 to vector<2x16x128xf32>
    %230 = arith.mulf %229, %227 : vector<2x16x128xf32>
    %231 = arith.addf %221, %230 : vector<2x16x128xf32>
    %232 = vector.extract_strided_slice %10 {offsets = [0, 0, 22], sizes = [2, 16, 1], strides = [1, 1, 1]} : vector<2x16x32xf32> to vector<2x16x1xf32>
    %c0_97 = arith.constant 0 : index
    %c22 = arith.constant 22 : index
    %c0_98 = arith.constant 0 : index
    %233 = vector.load %arg11[%c0_97, %c22, %c0_98] : memref<2x32x128xf32, #tpu.memory_space<vmem>>, vector<2x1x128xf32>
    %234 = vector.broadcast %232 : vector<2x16x1xf32> to vector<2x16x128xf32>
    %235 = vector.broadcast %233 : vector<2x1x128xf32> to vector<2x16x128xf32>
    %236 = arith.addf %234, %235 : vector<2x16x128xf32>
    %237 = math.tanh %236 : vector<2x16x128xf32>
    %c0_99 = arith.constant 0 : index
    %c22_100 = arith.constant 22 : index
    %238 = memref.load %arg8[%c0_99, %c22_100] : memref<1x32xf32, #tpu.memory_space<smem>>
    %239 = vector.broadcast %238 : f32 to vector<2x16x128xf32>
    %240 = arith.mulf %239, %237 : vector<2x16x128xf32>
    %241 = arith.addf %231, %240 : vector<2x16x128xf32>
    %242 = vector.extract_strided_slice %10 {offsets = [0, 0, 23], sizes = [2, 16, 1], strides = [1, 1, 1]} : vector<2x16x32xf32> to vector<2x16x1xf32>
    %c0_101 = arith.constant 0 : index
    %c23 = arith.constant 23 : index
    %c0_102 = arith.constant 0 : index
    %243 = vector.load %arg11[%c0_101, %c23, %c0_102] : memref<2x32x128xf32, #tpu.memory_space<vmem>>, vector<2x1x128xf32>
    %244 = vector.broadcast %242 : vector<2x16x1xf32> to vector<2x16x128xf32>
    %245 = vector.broadcast %243 : vector<2x1x128xf32> to vector<2x16x128xf32>
    %246 = arith.addf %244, %245 : vector<2x16x128xf32>
    %247 = math.tanh %246 : vector<2x16x128xf32>
    %c0_103 = arith.constant 0 : index
    %c23_104 = arith.constant 23 : index
    %248 = memref.load %arg8[%c0_103, %c23_104] : memref<1x32xf32, #tpu.memory_space<smem>>
    %249 = vector.broadcast %248 : f32 to vector<2x16x128xf32>
    %250 = arith.mulf %249, %247 : vector<2x16x128xf32>
    %251 = arith.addf %241, %250 : vector<2x16x128xf32>
    %252 = vector.extract_strided_slice %10 {offsets = [0, 0, 24], sizes = [2, 16, 1], strides = [1, 1, 1]} : vector<2x16x32xf32> to vector<2x16x1xf32>
    %c0_105 = arith.constant 0 : index
    %c24 = arith.constant 24 : index
    %c0_106 = arith.constant 0 : index
    %253 = vector.load %arg11[%c0_105, %c24, %c0_106] : memref<2x32x128xf32, #tpu.memory_space<vmem>>, vector<2x1x128xf32>
    %254 = vector.broadcast %252 : vector<2x16x1xf32> to vector<2x16x128xf32>
    %255 = vector.broadcast %253 : vector<2x1x128xf32> to vector<2x16x128xf32>
    %256 = arith.addf %254, %255 : vector<2x16x128xf32>
    %257 = math.tanh %256 : vector<2x16x128xf32>
    %c0_107 = arith.constant 0 : index
    %c24_108 = arith.constant 24 : index
    %258 = memref.load %arg8[%c0_107, %c24_108] : memref<1x32xf32, #tpu.memory_space<smem>>
    %259 = vector.broadcast %258 : f32 to vector<2x16x128xf32>
    %260 = arith.mulf %259, %257 : vector<2x16x128xf32>
    %261 = arith.addf %251, %260 : vector<2x16x128xf32>
    %262 = vector.extract_strided_slice %10 {offsets = [0, 0, 25], sizes = [2, 16, 1], strides = [1, 1, 1]} : vector<2x16x32xf32> to vector<2x16x1xf32>
    %c0_109 = arith.constant 0 : index
    %c25 = arith.constant 25 : index
    %c0_110 = arith.constant 0 : index
    %263 = vector.load %arg11[%c0_109, %c25, %c0_110] : memref<2x32x128xf32, #tpu.memory_space<vmem>>, vector<2x1x128xf32>
    %264 = vector.broadcast %262 : vector<2x16x1xf32> to vector<2x16x128xf32>
    %265 = vector.broadcast %263 : vector<2x1x128xf32> to vector<2x16x128xf32>
    %266 = arith.addf %264, %265 : vector<2x16x128xf32>
    %267 = math.tanh %266 : vector<2x16x128xf32>
    %c0_111 = arith.constant 0 : index
    %c25_112 = arith.constant 25 : index
    %268 = memref.load %arg8[%c0_111, %c25_112] : memref<1x32xf32, #tpu.memory_space<smem>>
    %269 = vector.broadcast %268 : f32 to vector<2x16x128xf32>
    %270 = arith.mulf %269, %267 : vector<2x16x128xf32>
    %271 = arith.addf %261, %270 : vector<2x16x128xf32>
    %272 = vector.extract_strided_slice %10 {offsets = [0, 0, 26], sizes = [2, 16, 1], strides = [1, 1, 1]} : vector<2x16x32xf32> to vector<2x16x1xf32>
    %c0_113 = arith.constant 0 : index
    %c26 = arith.constant 26 : index
    %c0_114 = arith.constant 0 : index
    %273 = vector.load %arg11[%c0_113, %c26, %c0_114] : memref<2x32x128xf32, #tpu.memory_space<vmem>>, vector<2x1x128xf32>
    %274 = vector.broadcast %272 : vector<2x16x1xf32> to vector<2x16x128xf32>
    %275 = vector.broadcast %273 : vector<2x1x128xf32> to vector<2x16x128xf32>
    %276 = arith.addf %274, %275 : vector<2x16x128xf32>
    %277 = math.tanh %276 : vector<2x16x128xf32>
    %c0_115 = arith.constant 0 : index
    %c26_116 = arith.constant 26 : index
    %278 = memref.load %arg8[%c0_115, %c26_116] : memref<1x32xf32, #tpu.memory_space<smem>>
    %279 = vector.broadcast %278 : f32 to vector<2x16x128xf32>
    %280 = arith.mulf %279, %277 : vector<2x16x128xf32>
    %281 = arith.addf %271, %280 : vector<2x16x128xf32>
    %282 = vector.extract_strided_slice %10 {offsets = [0, 0, 27], sizes = [2, 16, 1], strides = [1, 1, 1]} : vector<2x16x32xf32> to vector<2x16x1xf32>
    %c0_117 = arith.constant 0 : index
    %c27 = arith.constant 27 : index
    %c0_118 = arith.constant 0 : index
    %283 = vector.load %arg11[%c0_117, %c27, %c0_118] : memref<2x32x128xf32, #tpu.memory_space<vmem>>, vector<2x1x128xf32>
    %284 = vector.broadcast %282 : vector<2x16x1xf32> to vector<2x16x128xf32>
    %285 = vector.broadcast %283 : vector<2x1x128xf32> to vector<2x16x128xf32>
    %286 = arith.addf %284, %285 : vector<2x16x128xf32>
    %287 = math.tanh %286 : vector<2x16x128xf32>
    %c0_119 = arith.constant 0 : index
    %c27_120 = arith.constant 27 : index
    %288 = memref.load %arg8[%c0_119, %c27_120] : memref<1x32xf32, #tpu.memory_space<smem>>
    %289 = vector.broadcast %288 : f32 to vector<2x16x128xf32>
    %290 = arith.mulf %289, %287 : vector<2x16x128xf32>
    %291 = arith.addf %281, %290 : vector<2x16x128xf32>
    %292 = vector.extract_strided_slice %10 {offsets = [0, 0, 28], sizes = [2, 16, 1], strides = [1, 1, 1]} : vector<2x16x32xf32> to vector<2x16x1xf32>
    %c0_121 = arith.constant 0 : index
    %c28 = arith.constant 28 : index
    %c0_122 = arith.constant 0 : index
    %293 = vector.load %arg11[%c0_121, %c28, %c0_122] : memref<2x32x128xf32, #tpu.memory_space<vmem>>, vector<2x1x128xf32>
    %294 = vector.broadcast %292 : vector<2x16x1xf32> to vector<2x16x128xf32>
    %295 = vector.broadcast %293 : vector<2x1x128xf32> to vector<2x16x128xf32>
    %296 = arith.addf %294, %295 : vector<2x16x128xf32>
    %297 = math.tanh %296 : vector<2x16x128xf32>
    %c0_123 = arith.constant 0 : index
    %c28_124 = arith.constant 28 : index
    %298 = memref.load %arg8[%c0_123, %c28_124] : memref<1x32xf32, #tpu.memory_space<smem>>
    %299 = vector.broadcast %298 : f32 to vector<2x16x128xf32>
    %300 = arith.mulf %299, %297 : vector<2x16x128xf32>
    %301 = arith.addf %291, %300 : vector<2x16x128xf32>
    %302 = vector.extract_strided_slice %10 {offsets = [0, 0, 29], sizes = [2, 16, 1], strides = [1, 1, 1]} : vector<2x16x32xf32> to vector<2x16x1xf32>
    %c0_125 = arith.constant 0 : index
    %c29 = arith.constant 29 : index
    %c0_126 = arith.constant 0 : index
    %303 = vector.load %arg11[%c0_125, %c29, %c0_126] : memref<2x32x128xf32, #tpu.memory_space<vmem>>, vector<2x1x128xf32>
    %304 = vector.broadcast %302 : vector<2x16x1xf32> to vector<2x16x128xf32>
    %305 = vector.broadcast %303 : vector<2x1x128xf32> to vector<2x16x128xf32>
    %306 = arith.addf %304, %305 : vector<2x16x128xf32>
    %307 = math.tanh %306 : vector<2x16x128xf32>
    %c0_127 = arith.constant 0 : index
    %c29_128 = arith.constant 29 : index
    %308 = memref.load %arg8[%c0_127, %c29_128] : memref<1x32xf32, #tpu.memory_space<smem>>
    %309 = vector.broadcast %308 : f32 to vector<2x16x128xf32>
    %310 = arith.mulf %309, %307 : vector<2x16x128xf32>
    %311 = arith.addf %301, %310 : vector<2x16x128xf32>
    %312 = vector.extract_strided_slice %10 {offsets = [0, 0, 30], sizes = [2, 16, 1], strides = [1, 1, 1]} : vector<2x16x32xf32> to vector<2x16x1xf32>
    %c0_129 = arith.constant 0 : index
    %c30 = arith.constant 30 : index
    %c0_130 = arith.constant 0 : index
    %313 = vector.load %arg11[%c0_129, %c30, %c0_130] : memref<2x32x128xf32, #tpu.memory_space<vmem>>, vector<2x1x128xf32>
    %314 = vector.broadcast %312 : vector<2x16x1xf32> to vector<2x16x128xf32>
    %315 = vector.broadcast %313 : vector<2x1x128xf32> to vector<2x16x128xf32>
    %316 = arith.addf %314, %315 : vector<2x16x128xf32>
    %317 = math.tanh %316 : vector<2x16x128xf32>
    %c0_131 = arith.constant 0 : index
    %c30_132 = arith.constant 30 : index
    %318 = memref.load %arg8[%c0_131, %c30_132] : memref<1x32xf32, #tpu.memory_space<smem>>
    %319 = vector.broadcast %318 : f32 to vector<2x16x128xf32>
    %320 = arith.mulf %319, %317 : vector<2x16x128xf32>
    %321 = arith.addf %311, %320 : vector<2x16x128xf32>
    %322 = vector.extract_strided_slice %10 {offsets = [0, 0, 31], sizes = [2, 16, 1], strides = [1, 1, 1]} : vector<2x16x32xf32> to vector<2x16x1xf32>
    %c0_133 = arith.constant 0 : index
    %c31 = arith.constant 31 : index
    %c0_134 = arith.constant 0 : index
    %323 = vector.load %arg11[%c0_133, %c31, %c0_134] : memref<2x32x128xf32, #tpu.memory_space<vmem>>, vector<2x1x128xf32>
    %324 = vector.broadcast %322 : vector<2x16x1xf32> to vector<2x16x128xf32>
    %325 = vector.broadcast %323 : vector<2x1x128xf32> to vector<2x16x128xf32>
    %326 = arith.addf %324, %325 : vector<2x16x128xf32>
    %327 = math.tanh %326 : vector<2x16x128xf32>
    %c0_135 = arith.constant 0 : index
    %c31_136 = arith.constant 31 : index
    %328 = memref.load %arg8[%c0_135, %c31_136] : memref<1x32xf32, #tpu.memory_space<smem>>
    %329 = vector.broadcast %328 : f32 to vector<2x16x128xf32>
    %330 = arith.mulf %329, %327 : vector<2x16x128xf32>
    %331 = arith.addf %321, %330 : vector<2x16x128xf32>
    %cst_137 = arith.constant dense<0xFF800000> : vector<2x16xf32>
    %332 = vector.multi_reduction <maximumf>, %331, %cst_137 [2] : vector<2x16x128xf32> to vector<2x16xf32>
    %333 = vector.shape_cast %332 : vector<2x16xf32> to vector<2x16x1xf32>
    %334 = vector.broadcast %333 : vector<2x16x1xf32> to vector<2x16x128xf32>
    %335 = arith.subf %331, %334 : vector<2x16x128xf32>
    %336 = math.exp %335 : vector<2x16x128xf32>
    %cst_138 = arith.constant dense<0.000000e+00> : vector<2x16xf32>
    %337 = vector.multi_reduction <add>, %336, %cst_138 [2] : vector<2x16x128xf32> to vector<2x16xf32>
    %338 = vector.shape_cast %337 : vector<2x16xf32> to vector<2x16x1xf32>
    %339 = tpu.reciprocal %338 : vector<2x16x1xf32> -> vector<2x16x1xf32>
    %340 = vector.broadcast %339 : vector<2x16x1xf32> to vector<2x16x128xf32>
    %341 = arith.mulf %336, %340 : vector<2x16x128xf32>
    %c0_139 = arith.constant 0 : index
    %c0_140 = arith.constant 0 : index
    %c0_141 = arith.constant 0 : index
    %342 = vector.load %arg10[%c0_139, %c0_140, %c0_141] : memref<2x16x128xf32, #tpu.memory_space<vmem>>, vector<2x16x128xf32>
    tpu.vector_store %arg10[%c0_139, %c0_140, %c0_141], %341 {strides = array<i32>} : memref<2x16x128xf32, #tpu.memory_space<vmem>>, vector<2x16x128xf32>,
    %c0_142 = arith.constant 0 : index
    %c0_143 = arith.constant 0 : index
    %c0_144 = arith.constant 0 : index
    %343 = vector.load %arg3[%c0_142, %c0_143, %c0_144] : memref<2x128x32xf32, #tpu.memory_space<vmem>>, vector<2x128x32xf32>
    "tpu.trace_start"() <{level = 10 : i32, message = "bql,bld->bqd"}> : () -> ()
    %cst_145 = arith.constant dense<0.000000e+00> : vector<2x16x32xf32>
    %344 = tpu.matmul %341, %343, %cst_145 {dimension_numbers = #tpu.dot_dimension_numbers<[2], [1], [1], [2], [0, 0, 0, 1, 1, 2], [0], [0]>} : vector<2x16x128xf32>, vector<2x128x32xf32>, vector<2x16x32xf32> -> vector<2x16x32xf32>
    "tpu.trace_stop"() : () -> ()
    %c0_146 = arith.constant 0 : index
    %c0_147 = arith.constant 0 : index
    %c0_148 = arith.constant 0 : index
    %345 = vector.load %arg9[%c0_146, %c0_147, %c0_148] : memref<2x16x32xf32, #tpu.memory_space<vmem>>, vector<2x16x32xf32>
    tpu.vector_store %arg9[%c0_146, %c0_147, %c0_148], %344 {strides = array<i32>} : memref<2x16x32xf32, #tpu.memory_space<vmem>>, vector<2x16x32xf32>,
    return
  }
  func.func @transform_0(%arg0: i32, %arg1: i32) -> (i32, i32, i32) {
    %c0_i32 = arith.constant 0 : i32
    %c0_i32_0 = arith.constant 0 : i32
    return %arg0, %arg1, %c0_i32 : i32, i32, i32
  }
  func.func @transform_1(%arg0: i32, %arg1: i32) -> (i32, i32, i32) {
    %c0_i32 = arith.constant 0 : i32
    %c0_i32_0 = arith.constant 0 : i32
    %c0_i32_1 = arith.constant 0 : i32
    return %arg0, %c0_i32, %c0_i32_0 : i32, i32, i32
  }
  func.func @transform_2(%arg0: i32, %arg1: i32) -> (i32, i32, i32) {
    %c0_i32 = arith.constant 0 : i32
    %c0_i32_0 = arith.constant 0 : i32
    %c0_i32_1 = arith.constant 0 : i32
    return %arg0, %c0_i32, %c0_i32_0 : i32, i32, i32
  }
  func.func @transform_3(%arg0: i32, %arg1: i32) -> (i32, i32) {
    %c0_i32 = arith.constant 0 : i32
    %c0_i32_0 = arith.constant 0 : i32
    %c0_i32_1 = arith.constant 0 : i32
    return %c0_i32, %c0_i32_0 : i32, i32
  }
  func.func @transform_4(%arg0: i32, %arg1: i32) -> (i32, i32) {
    %c0_i32 = arith.constant 0 : i32
    %c0_i32_0 = arith.constant 0 : i32
    %c0_i32_1 = arith.constant 0 : i32
    return %c0_i32, %c0_i32_0 : i32, i32
  }
  func.func @transform_5(%arg0: i32, %arg1: i32) -> (i32, i32) {
    %c0_i32 = arith.constant 0 : i32
    %c0_i32_0 = arith.constant 0 : i32
    %c0_i32_1 = arith.constant 0 : i32
    return %c0_i32, %c0_i32_0 : i32, i32
  }
  func.func @transform_6(%arg0: i32, %arg1: i32) -> (i32, i32) {
    %c0_i32 = arith.constant 0 : i32
    %c0_i32_0 = arith.constant 0 : i32
    %c0_i32_1 = arith.constant 0 : i32
    return %c0_i32, %c0_i32_0 : i32, i32
  }
  func.func @transform_7(%arg0: i32, %arg1: i32) -> (i32, i32, i32) {
    %c0_i32 = arith.constant 0 : i32
    %c0_i32_0 = arith.constant 0 : i32
    return %arg0, %arg1, %c0_i32 : i32, i32, i32
  }
  func.func @transform_8(%arg0: i32, %arg1: i32) -> (i32, i32, i32) {
    %c0_i32 = arith.constant 0 : i32
    %c0_i32_0 = arith.constant 0 : i32
    return %arg0, %arg1, %c0_i32 : i32, i32, i32
  }
}

</mosaic_0001>

<llo_original>
// kernel: tpu_custom_call.1
$region0: #{tpu_custom_call.1}
  #allocation0 [shape = 'u32[]', space=smem, size = 0x4, offset = 0x4, fixed_abs, tag = 'smem constant byte address 0x4 - core index']
  #allocation1 [shape = 'u32[72,128]{1,0:T(1,128)}', space=vmem, size = 0x9000, scoped, tag = 'internal scratch']
  #allocation2 [shape = 'f32[2,32,128]{2,1,0:T(8,128)}', space=vmem, size = 0x8000, scoped, tag = 'scratch operand']
  %s0 = inlined_call_operand.vmem [shape: f32[4,16,32], index: 0, kind: input, shape index: {}]
  %s1 = inlined_call_operand.vmem [shape: f32[4,128,32], index: 1, kind: input, shape index: {}]
  %s2 = inlined_call_operand.vmem [shape: f32[4,32,128], index: 2, kind: input, shape index: {}]
  %s3 = inlined_call_operand.vmem [shape: f32[32,32], index: 3, kind: input, shape index: {}]
  %s4 = inlined_call_operand.vmem [shape: f32[1,32], index: 4, kind: input, shape index: {}]
  %s5 = inlined_call_operand.vmem [shape: f32[32,32], index: 5, kind: input, shape index: {}]
  %s6 = inlined_call_operand.vmem [shape: f32[1,32], index: 6, kind: input, shape index: {}]
  %s7 = inlined_call_operand.hbm [shape: f32[4,16,32], index: 7, kind: output, shape index: {0}]
  %s8 = inlined_call_operand.hbm [shape: f32[4,16,128], index: 8, kind: output, shape index: {1}]
  %9 = xla_tuple %s7, %s8
  %s10 = sld [smem:[#allocation0]]
  $region77: #{tpu_custom_call.1} parent=0
    _
  %s12 = ssub.s32 1, %s10
  %s13 = scalar_select 0, %s12, %s10
  $region1: #{tpu_custom_call.1} parent=0
    #allocation3 [shape = 'u8[512]{0}', space=smem, size = 0x200, scoped, tag = 'input window, operand 6, single buffered']
    #allocation4 [shape = 's32[2]{0}', space=sflag, size = 0x8, scoped, tag = 'scoped memory for tpu_custom_call.1']
    #allocation5 [shape = 's32[2]{0}', space=sflag, size = 0x8, scoped, tag = 'scoped memory for tpu_custom_call.1']
    #allocation6 [shape = 'u8[32768]{0}', space=vmem, size = 0x8000, scoped, tag = 'output window, operand 0']
    #allocation7 [shape = 'u8[32768]{0}', space=vmem, size = 0x8000, scoped, tag = 'output window, operand 1']
    #allocation8 [shape = 's32[2]{0}', space=sflag, size = 0x8, scoped, tag = 'scoped memory for tpu_custom_call.1']
    %14 = vsyncpa [#allocation5], 0
    %15 = vsyncpa [#allocation4], 0
    %s16 = scalar_lea.sflag [#allocation4], 1
    %17 = vsyncpa %s16, 0
    %18 = vsyncpa [#allocation8], 0
    %s19 = scalar_lea.sflag [#allocation8], 1
    %20 = vsyncpa %s19, 0
    loop: start=0, step=1, limit=4
    $region2: #{tpu_custom_call.1} parent=1 // loop_pre_header
      _
    $region3: #{tpu_custom_call.1} parent=1 // loop_header
      %s22 = sphi 0, %s26
      %p23 = scmp.ge.s32.totalorder %s22, 4
      %s29 = sphi 0, %s41
      %s30 = sphi 0, %s37
      %s31 = sphi 0, %s29
      %s32 = sphi 0, %s30
      %s33 = sphi 0, %s31
      %s34 = sphi 0, %s32
      %s46 = sphi 0, %s48
      %s49 = sphi 0, %s46
      %s50 = sphi 0, %s49
      %s66 = sphi 0, %s50
      %s72 = sphi 0, %s74
      %s75 = sphi 0, %s72
      %s76 = sphi 0, %s75
      %s92 = sphi 0, %s76
      %s98 = sphi 0, %s100
      %s101 = sphi 0, %s98
      %s102 = sphi 0, %s101
      %s118 = sphi 0, %s102
      %s122 = sphi 0, %s122
      %s124 = sphi 0, %s122
      %s125 = sphi 0, %s124
      %s139 = sphi 0, %s125
      %s143 = sphi 0, %s143
      %s145 = sphi 0, %s143
      %s146 = sphi 0, %s145
      %s160 = sphi 0, %s146
      %s164 = sphi 0, %s164
      %s166 = sphi 0, %s164
      %s167 = sphi 0, %s166
      %s181 = sphi 0, %s167
      %s185 = sphi 0, %s185
      %s187 = sphi 0, %s185
      %s188 = sphi 0, %s187
      %s202 = sphi 0, %s188
      %s210 = sphi 0, %s212
      %s213 = sphi 0, %s210
      %s214 = sphi 0, %s213
      %s230 = sphi 0, %s214
      %s238 = sphi 0, %s240
      %s241 = sphi 0, %s238
      %s242 = sphi 0, %s241
      %s258 = sphi 0, %s242
    $region4: #{tpu_custom_call.1} parent=1 // loop_header_branch
      %25 = sbr.rel (%p23) target = $region8
    $region5: #{tpu_custom_call.1} parent=1 // loop_body
      %s27 = ssub.s32 %s22, 1
      %s28 = ssub.s32 %s22, 2
      %s35 = sadd.s32 1, %s30
      %p36 = scmp.ge.s32.totalorder %s35, 1
      %s37 = scalar_select %p36, 0, %s35
      %s38 = sadd.s32 1, %s29
      %s39 = scalar_select %p36, %s38, %s29
      %p40 = scmp.ge.s32.totalorder %s39, 2
      %s41 = scalar_select %p40, 0, %s39
      %s42 = ssub.s32 %s29, %s41
      %s43 = ssub.s32 %s30, %s37
      %s44 = sor.u32 %s42, %s43
      %p45 = scmp.eq.s32.totalorder %s44, 0
      %s47 = sadd.s32 %s46, 1
      %s48 = scalar_select %p45, %s46, %s47
      %p51 = pneg %p45
      %p52 = scmp.eq.s32.totalorder %s22, 1
      %p53 = por %p51, %p52
      %p54 = scmp.ne.s32.totalorder %s46, %s49
      %p55 = scmp.eq.s32.totalorder %s22, 0
      %p56 = por %p54, %p55
      %p57 = scmp.ne.s32.totalorder %s46, %s49
      %p58 = scmp.eq.s32.totalorder %s27, 1
      %p59 = por %p57, %p58
      %p60 = scmp.ne.s32.totalorder %s49, %s50
      %p61 = scmp.eq.s32.totalorder %s27, 0
      %p62 = por %p60, %p61
      %p63 = scmp.ne.s32.totalorder %s49, %s50
      %p64 = scmp.eq.s32.totalorder %s28, 1
      %p65 = por %p63, %p64
      %p67 = scmp.ne.s32.totalorder %s50, %s66
      %p68 = scmp.eq.s32.totalorder %s28, 0
      %p69 = por %p67, %p68
      %s70 = ssub.s32 %s29, %s41
      %p71 = scmp.eq.s32.totalorder %s70, 0
      %s73 = sadd.s32 %s72, 1
      %s74 = scalar_select %p71, %s72, %s73
      %p77 = pneg %p71
      %p78 = scmp.eq.s32.totalorder %s22, 1
      %p79 = por %p77, %p78
      %p80 = scmp.ne.s32.totalorder %s72, %s75
      %p81 = scmp.eq.s32.totalorder %s22, 0
      %p82 = por %p80, %p81
      %p83 = scmp.ne.s32.totalorder %s72, %s75
      %p84 = scmp.eq.s32.totalorder %s27, 1
      %p85 = por %p83, %p84
      %p86 = scmp.ne.s32.totalorder %s75, %s76
      %p87 = scmp.eq.s32.totalorder %s27, 0
      %p88 = por %p86, %p87
      %p89 = scmp.ne.s32.totalorder %s75, %s76
      %p90 = scmp.eq.s32.totalorder %s28, 1
      %p91 = por %p89, %p90
      %p93 = scmp.ne.s32.totalorder %s76, %s92
      %p94 = scmp.eq.s32.totalorder %s28, 0
      %p95 = por %p93, %p94
      %s96 = ssub.s32 %s29, %s41
      %p97 = scmp.eq.s32.totalorder %s96, 0
      %s99 = sadd.s32 %s98, 1
      %s100 = scalar_select %p97, %s98, %s99
      %p103 = pneg %p97
      %p104 = scmp.eq.s32.totalorder %s22, 1
      %p105 = por %p103, %p104
      %p106 = scmp.ne.s32.totalorder %s98, %s101
      %p107 = scmp.eq.s32.totalorder %s22, 0
      %p108 = por %p106, %p107
      %p109 = scmp.ne.s32.totalorder %s98, %s101
      %p110 = scmp.eq.s32.totalorder %s27, 1
      %p111 = por %p109, %p110
      %p112 = scmp.ne.s32.totalorder %s101, %s102
      %p113 = scmp.eq.s32.totalorder %s27, 0
      %p114 = por %p112, %p113
      %p115 = scmp.ne.s32.totalorder %s101, %s102
      %p116 = scmp.eq.s32.totalorder %s28, 1
      %p117 = por %p115, %p116
      %p119 = scmp.ne.s32.totalorder %s102, %s118
      %p120 = scmp.eq.s32.totalorder %s28, 0
      %p121 = por %p119, %p120
      %s123 = sadd.s32 %s122, 1
      %p126 = scmp.eq.s32.totalorder %s22, 1
      %p127 = scmp.ne.s32.totalorder %s122, %s124
      %p128 = scmp.eq.s32.totalorder %s22, 0
      %p129 = por %p127, %p128
      %p130 = scmp.ne.s32.totalorder %s122, %s124
      %p131 = scmp.eq.s32.totalorder %s27, 1
      %p132 = por %p130, %p131
      %p133 = scmp.ne.s32.totalorder %s124, %s125
      %p134 = scmp.eq.s32.totalorder %s27, 0
      %p135 = por %p133, %p134
      %p136 = scmp.ne.s32.totalorder %s124, %s125
      %p137 = scmp.eq.s32.totalorder %s28, 1
      %p138 = por %p136, %p137
      %p140 = scmp.ne.s32.totalorder %s125, %s139
      %p141 = scmp.eq.s32.totalorder %s28, 0
      %p142 = por %p140, %p141
      %s144 = sadd.s32 %s143, 1
      %p147 = scmp.eq.s32.totalorder %s22, 1
      %p148 = scmp.ne.s32.totalorder %s143, %s145
      %p149 = scmp.eq.s32.totalorder %s22, 0
      %p150 = por %p148, %p149
      %p151 = scmp.ne.s32.totalorder %s143, %s145
      %p152 = scmp.eq.s32.totalorder %s27, 1
      %p153 = por %p151, %p152
      %p154 = scmp.ne.s32.totalorder %s145, %s146
      %p155 = scmp.eq.s32.totalorder %s27, 0
      %p156 = por %p154, %p155
      %p157 = scmp.ne.s32.totalorder %s145, %s146
      %p158 = scmp.eq.s32.totalorder %s28, 1
      %p159 = por %p157, %p158
      %p161 = scmp.ne.s32.totalorder %s146, %s160
      %p162 = scmp.eq.s32.totalorder %s28, 0
      %p163 = por %p161, %p162
      %s165 = sadd.s32 %s164, 1
      %p168 = scmp.eq.s32.totalorder %s22, 1
      %p169 = scmp.ne.s32.totalorder %s164, %s166
      %p170 = scmp.eq.s32.totalorder %s22, 0
      %p171 = por %p169, %p170
      %p172 = scmp.ne.s32.totalorder %s164, %s166
      %p173 = scmp.eq.s32.totalorder %s27, 1
      %p174 = por %p172, %p173
      %p175 = scmp.ne.s32.totalorder %s166, %s167
      %p176 = scmp.eq.s32.totalorder %s27, 0
      %p177 = por %p175, %p176
      %p178 = scmp.ne.s32.totalorder %s166, %s167
      %p179 = scmp.eq.s32.totalorder %s28, 1
      %p180 = por %p178, %p179
      %p182 = scmp.ne.s32.totalorder %s167, %s181
      %p183 = scmp.eq.s32.totalorder %s28, 0
      %p184 = por %p182, %p183
      %s186 = sadd.s32 %s185, 1
      %p189 = scmp.eq.s32.totalorder %s22, 1
      %p190 = scmp.ne.s32.totalorder %s185, %s187
      %p191 = scmp.eq.s32.totalorder %s22, 0
      %p192 = por %p190, %p191
      %p193 = scmp.ne.s32.totalorder %s185, %s187
      %p194 = scmp.eq.s32.totalorder %s27, 1
      %p195 = por %p193, %p194
      %p196 = scmp.ne.s32.totalorder %s187, %s188
      %p197 = scmp.eq.s32.totalorder %s27, 0
      %p198 = por %p196, %p197
      %p199 = scmp.ne.s32.totalorder %s187, %s188
      %p200 = scmp.eq.s32.totalorder %s28, 1
      %p201 = por %p199, %p200
      %p203 = scmp.ne.s32.totalorder %s188, %s202
      %p204 = scmp.eq.s32.totalorder %s28, 0
      %p205 = por %p203, %p204
      %s206 = ssub.s32 %s29, %s41
      %s207 = ssub.s32 %s30, %s37
      %s208 = sor.u32 %s206, %s207
      %p209 = scmp.eq.s32.totalorder %s208, 0
      %s211 = sadd.s32 %s210, 1
      %s212 = scalar_select %p209, %s210, %s211
      %p215 = pneg %p209
      %p216 = scmp.eq.s32.totalorder %s22, 1
      %p217 = por %p215, %p216
      %p218 = scmp.ne.s32.totalorder %s210, %s213
      %p219 = scmp.eq.s32.totalorder %s22, 0
      %p220 = por %p218, %p219
      %p221 = scmp.ne.s32.totalorder %s210, %s213
      %p222 = scmp.eq.s32.totalorder %s27, 1
      %p223 = por %p221, %p222
      %p224 = scmp.ne.s32.totalorder %s213, %s214
      %p225 = scmp.eq.s32.totalorder %s27, 0
      %p226 = por %p224, %p225
      %p227 = scmp.ne.s32.totalorder %s213, %s214
      %p228 = scmp.eq.s32.totalorder %s28, 1
      %p229 = por %p227, %p228
      %p231 = scmp.ne.s32.totalorder %s214, %s230
      %p232 = scmp.eq.s32.totalorder %s28, 0
      %p233 = por %p231, %p232
      %s234 = ssub.s32 %s29, %s41
      %s235 = ssub.s32 %s30, %s37
      %s236 = sor.u32 %s234, %s235
      %p237 = scmp.eq.s32.totalorder %s236, 0
      %s239 = sadd.s32 %s238, 1
      %s240 = scalar_select %p237, %s238, %s239
      %p243 = pneg %p237
      %p244 = scmp.eq.s32.totalorder %s22, 1
      %p245 = por %p243, %p244
      %p246 = scmp.ne.s32.totalorder %s238, %s241
      %p247 = scmp.eq.s32.totalorder %s22, 0
      %p248 = por %p246, %p247
      %p249 = scmp.ne.s32.totalorder %s238, %s241
      %p250 = scmp.eq.s32.totalorder %s27, 1
      %p251 = por %p249, %p250
      %p252 = scmp.ne.s32.totalorder %s241, %s242
      %p253 = scmp.eq.s32.totalorder %s27, 0
      %p254 = por %p252, %p253
      %p255 = scmp.ne.s32.totalorder %s241, %s242
      %p256 = scmp.eq.s32.totalorder %s28, 1
      %p257 = por %p255, %p256
      %p259 = scmp.ne.s32.totalorder %s242, %s258
      %p260 = scmp.eq.s32.totalorder %s28, 0
      %p261 = por %p259, %p260
      %p262 = scmp.le.s32.totalorder 1, %s22
      %p263 = scmp.lt.s32.totalorder %s22, 3
      %p264 = pnand %p262, %p263
      %p265 = pneg %p264
      // Predicated region
      $region9: #{tpu_custom_call.1} parent=5 // pred_check
        _
      $region10: #{tpu_custom_call.1} parent=5 // pred_check_branch
        %267 = sbr.rel (%p264) target = $region12
      $region11: #{tpu_custom_call.1} parent=5 // pred_region
        %s268 = ssub.s32 %s22, 1
        // Predicated region
        $region13: #{tpu_custom_call.1} parent=11 // pred_check
          %p269 = pneg %p135
        $region14: #{tpu_custom_call.1} parent=11 // pred_check_branch
          %271 = sbr.rel (%p269) target = $region16
        $region15: #{tpu_custom_call.1} parent=11 // pred_region
          _
        $region16: #{tpu_custom_call.1} parent=11 // pred_fallthru
          _
        // Predicated region
        $region17: #{tpu_custom_call.1} parent=11 // pred_check
          %p272 = pneg %p156
        $region18: #{tpu_custom_call.1} parent=11 // pred_check_branch
          %274 = sbr.rel (%p272) target = $region20
        $region19: #{tpu_custom_call.1} parent=11 // pred_region
          _
        $region20: #{tpu_custom_call.1} parent=11 // pred_fallthru
          _
        // Predicated region
        $region21: #{tpu_custom_call.1} parent=11 // pred_check
          %p275 = pneg %p177
        $region22: #{tpu_custom_call.1} parent=11 // pred_check_branch
          %277 = sbr.rel (%p275) target = $region24
        $region23: #{tpu_custom_call.1} parent=11 // pred_region
          _
        $region24: #{tpu_custom_call.1} parent=11 // pred_fallthru
          _
        // Predicated region
        $region25: #{tpu_custom_call.1} parent=11 // pred_check
          %p278 = pneg %p198
        $region26: #{tpu_custom_call.1} parent=11 // pred_check_branch
          %280 = sbr.rel (%p278) target = $region28
        $region27: #{tpu_custom_call.1} parent=11 // pred_region
          %282 = vsyncadd [#allocation5], 0
          %s284 = sshll.u32 %s6, 4
          %s285 = int_to_ptr.vmem [resolvable:$true] %s284
          %287 = dma.vmem_to_smem %s285, 16, [#allocation3], [#allocation5]
        $region28: #{tpu_custom_call.1} parent=11 // pred_fallthru
          _
      $region12: #{tpu_custom_call.1} parent=5 // pred_fallthru
        _
      %p288 = scmp.lt.s32.totalorder %s22, 2
      // Predicated region
      $region29: #{tpu_custom_call.1} parent=5 // pred_check
        %p289 = pneg %p288
      $region30: #{tpu_custom_call.1} parent=5 // pred_check_branch
        %291 = sbr.rel (%p289) target = $region32
      $region31: #{tpu_custom_call.1} parent=5 // pred_region
        // Predicated region
        $region33: #{tpu_custom_call.1} parent=31 // pred_check
          %p292 = pneg %p56
        $region34: #{tpu_custom_call.1} parent=31 // pred_check_branch
          %294 = sbr.rel (%p292) target = $region36
        $region35: #{tpu_custom_call.1} parent=31 // pred_region
          %s295 = smul.u32 2, %s29
          %s296 = smul.u32 2, %s30
          %p297 = scmp.lt.s32.totalorder %s295, 3
          %s298 = scalar_select %p297, %s295, 3
          %p299 = scmp.lt.s32.totalorder %s296, 1
          %s300 = scalar_select %p299, %s296, 1
          %s301 = smul.addr %s298, 2
          %s302 = sadd.s32 %s300, %s301
          %s303 = smul.addr %s302, 8
          %s304 = scalar_lea.vmem %s0, %s303
          %s305 = smul.u32 2, %s29
          %s306 = smul.u32 2, %s30
        $region36: #{tpu_custom_call.1} parent=31 // pred_fallthru
          _
        // Predicated region
        $region37: #{tpu_custom_call.1} parent=31 // pred_check
          %p307 = pneg %p82
        $region38: #{tpu_custom_call.1} parent=31 // pred_check_branch
          %309 = sbr.rel (%p307) target = $region40
        $region39: #{tpu_custom_call.1} parent=31 // pred_region
          %s310 = smul.u32 2, %s29
          %p311 = scmp.lt.s32.totalorder %s310, 3
          %s312 = scalar_select %p311, %s310, 3
          %s313 = smul.addr %s312, 16
          %s314 = smul.addr %s313, 8
          %s315 = scalar_lea.vmem %s1, %s314
          %s316 = smul.u32 2, %s29
        $region40: #{tpu_custom_call.1} parent=31 // pred_fallthru
          _
        // Predicated region
        $region41: #{tpu_custom_call.1} parent=31 // pred_check
          %p317 = pneg %p108
        $region42: #{tpu_custom_call.1} parent=31 // pred_check_branch
          %319 = sbr.rel (%p317) target = $region44
        $region43: #{tpu_custom_call.1} parent=31 // pred_region
          %s320 = smul.u32 2, %s29
          %p321 = scmp.lt.s32.totalorder %s320, 3
          %s322 = scalar_select %p321, %s320, 3
          %s323 = smul.addr %s322, 4
          %s324 = smul.addr %s323, 8
          %s325 = scalar_lea.vmem %s2, %s324
          %s326 = smul.u32 2, %s29
        $region44: #{tpu_custom_call.1} parent=31 // pred_fallthru
          _
      $region32: #{tpu_custom_call.1} parent=5 // pred_fallthru
        _
      %p327 = scmp.le.s32.totalorder 1, %s22
      %p328 = scmp.lt.s32.totalorder %s22, 3
      %p329 = pnand %p327, %p328
      %p330 = pneg %p329
      // Predicated region
      $region45: #{tpu_custom_call.1} parent=5 // pred_check
        _
      $region46: #{tpu_custom_call.1} parent=5 // pred_check_branch
        %332 = sbr.rel (%p329) target = $region48
      $region47: #{tpu_custom_call.1} parent=5 // pred_region
        %s333 = ssub.s32 %s22, 1
        // Predicated region
        $region49: #{tpu_custom_call.1} parent=47 // pred_check
          %p334 = pneg %p198
        $region50: #{tpu_custom_call.1} parent=47 // pred_check_branch
          %336 = sbr.rel (%p334) target = $region52
        $region51: #{tpu_custom_call.1} parent=47 // pred_region
          %338 = dma.done [#allocation5], 16
        $region52: #{tpu_custom_call.1} parent=47 // pred_fallthru
          _
        %339 = sfence
        %s340 = smul.u32 2, %s31
        %s341 = smul.u32 2, %s32
        %p342 = scmp.lt.s32.totalorder %s340, 3
        %s343 = scalar_select %p342, %s340, 3
        %p344 = scmp.lt.s32.totalorder %s341, 1
        %s345 = scalar_select %p344, %s341, 1
        %s346 = smul.addr %s343, 2
        %s347 = sadd.s32 %s345, %s346
        %s348 = smul.addr %s347, 8
        %s349 = scalar_lea.vmem %s0, %s348
        %p350 = pneg %p62
        %p351 = pneg %p59
        %s352 = smul.u32 2, %s31
        %p353 = scmp.lt.s32.totalorder %s352, 3
        %s354 = scalar_select %p353, %s352, 3
        %s355 = smul.addr %s354, 16
        %s356 = smul.addr %s355, 8
        %s357 = scalar_lea.vmem %s1, %s356
        %p358 = pneg %p88
        %p359 = pneg %p85
        %s360 = smul.u32 2, %s31
        %p361 = scmp.lt.s32.totalorder %s360, 3
        %s362 = scalar_select %p361, %s360, 3
        %s363 = smul.addr %s362, 4
        %s364 = smul.addr %s363, 8
        %s365 = scalar_lea.vmem %s2, %s364
        %p366 = pneg %p114
        %p367 = pneg %p111
        %p368 = pneg %p135
        %p369 = pneg %p132
        %p370 = pneg %p156
        %p371 = pneg %p153
        %p372 = pneg %p177
        %p373 = pneg %p174
        %p374 = pneg %p198
        %p375 = pneg %p195
        %p376 = pneg %p226
        %p377 = pneg %p223
        %s378 = sand.u32 %s213, 1
        %s379 = scalar_lea.sflag [#allocation4], %s378
        %s380 = sand.u32 %s213, 1
        %s381 = smul.addr %s380, 32
        %s382 = scalar_lea.vmem [#allocation6], %s381
        %p383 = pneg %p254
        %p384 = pneg %p251
        %s385 = sand.u32 %s241, 1
        %s386 = scalar_lea.sflag [#allocation8], %s385
        %s387 = sand.u32 %s241, 1
        %s388 = smul.addr %s387, 32
        %s389 = scalar_lea.vmem [#allocation7], %s388
        %s390 = smul.u32 2, %s31
        %s391 = smul.u32 2, %s32
        %p392 = scmp.lt.s32.totalorder %s390, 3
        %s393 = scalar_select %p392, %s390, 3
        %p394 = scmp.lt.s32.totalorder %s391, 1
        %s395 = scalar_select %p394, %s391, 1
        %s396 = smul.addr %s393, 2
        %s397 = sadd.s32 %s395, %s396
        %s398 = smul.addr %s397, 8
        %s399 = scalar_lea.vmem %s0, %s398
        %s400 = smul.u32 2, %s31
        %s401 = smul.u32 2, %s32
        %s402 = smul.u32 2, %s31
        %p403 = scmp.lt.s32.totalorder %s402, 3
        %s404 = scalar_select %p403, %s402, 3
        %s405 = smul.addr %s404, 16
        %s406 = smul.addr %s405, 8
        %s407 = scalar_lea.vmem %s1, %s406
        %s408 = smul.u32 2, %s31
        %s409 = smul.u32 2, %s31
        %p410 = scmp.lt.s32.totalorder %s409, 3
        %s411 = scalar_select %p410, %s409, 3
        %s412 = smul.addr %s411, 4
        %s413 = smul.addr %s412, 8
        %s414 = scalar_lea.vmem %s2, %s413
        %s415 = smul.u32 2, %s31
        %s416 = smul.u32 2, %s31
        %s417 = smul.u32 2, %s32
        %s418 = smul.u32 2, %s31
        %s419 = smul.u32 2, %s32
        %p420 = scmp.eq.s32.totalorder %s32, 0
        // Predicated region
        $region53: #{tpu_custom_call.1} parent=47 // pred_check
          %p421 = pneg %p420
        $region54: #{tpu_custom_call.1} parent=47 // pred_check_branch
          %423 = sbr.rel (%p421) target = $region56
        $region55: #{tpu_custom_call.1} parent=47 // pred_region
          %v424 = vld [vmem:[%s5] sm:$0xff]
          %v425 = vld [vmem:[%s5 + $0x8] sm:$0xff]
          %v426 = vld [vmem:[%s5 + $0x10] sm:$0xff]
          %v427 = vld [vmem:[%s5 + $0x18] sm:$0xff]
          %v428 = vld [vmem:[%s414] sm:$0xff]
          %v429 = vld [vmem:[%s414 + $0x8] sm:$0xff]
          %v430 = vld [vmem:[%s414 + $0x10] sm:$0xff]
          %v431 = vld [vmem:[%s414 + $0x18] sm:$0xff]
          %vm432 = vcmask 261120
          %v434 = vsel %vm432, %v424, 0
          %v437 = vsel %vm432, %v425, 0
          %v440 = vsel %vm432, %v426, 0
          %v443 = vsel %vm432, %v427, 0
          %445 = vmatpush.msra.mxu0 0.0
          %446 = vmatpush.msra.mxu0 0.0
          %447 = vmatpush.msra.mxu0 0.0
          %448 = vmatpush.msra.mxu0 0.0
          %449 = vmatpush.msra.mxu0 0.0
          %450 = vmatpush.msra.mxu0 0.0
          %451 = vmatpush.msra.mxu0 0.0
          %452 = vmatpush.msra.mxu0 0.0
          %453 = vmatpush.msra.mxu0 0.0
          %454 = vmatpush.msra.mxu0 0.0
          %455 = vmatpush.msra.mxu0 0.0
          %456 = vmatpush.msra.mxu0 0.0
          %457 = vmatpush.msra.mxu0 %v431
          %458 = vmatpush.msra.mxu0 %v430
          %459 = vmatpush.msra.mxu0 %v429
          %460 = vmatpush.msra.mxu0 %v428
          %461 = vmatmul.f32.gmra.mxu0 %v434
          %v462 = vpop.f32.mrf.mxu0
          %v463 = vadd.f32 0.0, %v462
          %464 = vmatmul.f32.gmra.mxu0 %v437
          %v465 = vpop.f32.mrf.mxu0
          %v466 = vadd.f32 0.0, %v465
          %467 = vmatmul.f32.gmra.mxu0 %v440
          %v468 = vpop.f32.mrf.mxu0
          %v469 = vadd.f32 0.0, %v468
          %470 = vmatmul.f32.gmra.mxu0 %v443
          %v471 = vpop.f32.mrf.mxu0
          %v472 = vadd.f32 0.0, %v471
          %473 = vdwg.mxu0
          %474 = vst [vmem:[#allocation2] sm:$0xff] %v463
          %475 = vst [vmem:[#allocation2 + $0x8] sm:$0xff] %v466
          %476 = vst [vmem:[#allocation2 + $0x10] sm:$0xff] %v469
          %477 = vst [vmem:[#allocation2 + $0x18] sm:$0xff] %v472
          %v478 = vld [vmem:[%s5] sm:$0xff]
          %v479 = vld [vmem:[%s5 + $0x8] sm:$0xff]
          %v480 = vld [vmem:[%s5 + $0x10] sm:$0xff]
          %v481 = vld [vmem:[%s5 + $0x18] sm:$0xff]
          %s482 = scalar_lea.vmem %s414, 32
          %v483 = vld [vmem:[%s482] sm:$0xff]
          %v484 = vld [vmem:[%s482 + $0x8] sm:$0xff]
          %v485 = vld [vmem:[%s482 + $0x10] sm:$0xff]
          %v486 = vld [vmem:[%s482 + $0x18] sm:$0xff]
          %v488 = vsel %vm432, %v478, 0
          %v491 = vsel %vm432, %v479, 0
          %v494 = vsel %vm432, %v480, 0
          %v497 = vsel %vm432, %v481, 0
          %499 = vmatpush.msra.mxu0 0.0
          %500 = vmatpush.msra.mxu0 0.0
          %501 = vmatpush.msra.mxu0 0.0
          %502 = vmatpush.msra.mxu0 0.0
          %503 = vmatpush.msra.mxu0 0.0
          %504 = vmatpush.msra.mxu0 0.0
          %505 = vmatpush.msra.mxu0 0.0
          %506 = vmatpush.msra.mxu0 0.0
          %507 = vmatpush.msra.mxu0 0.0
          %508 = vmatpush.msra.mxu0 0.0
          %509 = vmatpush.msra.mxu0 0.0
          %510 = vmatpush.msra.mxu0 0.0
          %511 = vmatpush.msra.mxu0 %v486
          %512 = vmatpush.msra.mxu0 %v485
          %513 = vmatpush.msra.mxu0 %v484
          %514 = vmatpush.msra.mxu0 %v483
          %515 = vmatmul.f32.gmra.mxu0 %v488
          %v516 = vpop.f32.mrf.mxu0
          %v517 = vadd.f32 0.0, %v516
          %518 = vmatmul.f32.gmra.mxu0 %v491
          %v519 = vpop.f32.mrf.mxu0
          %v520 = vadd.f32 0.0, %v519
          %521 = vmatmul.f32.gmra.mxu0 %v494
          %v522 = vpop.f32.mrf.mxu0
          %v523 = vadd.f32 0.0, %v522
          %524 = vmatmul.f32.gmra.mxu0 %v497
          %v525 = vpop.f32.mrf.mxu0
          %v526 = vadd.f32 0.0, %v525
          %527 = vdwg.mxu0
          %s528 = scalar_lea.vmem [#allocation2], 32
          %529 = vst [vmem:[%s528] sm:$0xff] %v517
          %530 = vst [vmem:[%s528 + $0x8] sm:$0xff] %v520
          %531 = vst [vmem:[%s528 + $0x10] sm:$0xff] %v523
          %532 = vst [vmem:[%s528 + $0x18] sm:$0xff] %v526
        $region56: #{tpu_custom_call.1} parent=47 // pred_fallthru
          _
        %v533 = vld [vmem:[%s399] sm:$0xff]
        %v534 = vld [vmem:[%s399 + $0x8] sm:$0xff]
        %v535 = vld [vmem:[%s399 + $0x10] sm:$0xff]
        %v536 = vld [vmem:[%s399 + $0x18] sm:$0xff]
        %v537 = vld [vmem:[%s3] sm:$0xff]
        %v538 = vld [vmem:[%s3 + $0x8] sm:$0xff]
        %v539 = vld [vmem:[%s3 + $0x10] sm:$0xff]
        %v540 = vld [vmem:[%s3 + $0x18] sm:$0xff]
        %v541 = vld [vmem:[%s4] sm:$0x1]
        %v543 = vperm.slane %v541, 0
        %vm545 = vcmask 261120
        %v547 = vsel %vm545, %v533, 0
        %v550 = vsel %vm545, %v534, 0
        %v553 = vsel %vm545, %v535, 0
        %v556 = vsel %vm545, %v536, 0
        %558 = vmatpush.msra.mxu0 0.0
        %559 = vmatpush.msra.mxu0 0.0
        %560 = vmatpush.msra.mxu0 0.0
        %561 = vmatpush.msra.mxu0 0.0
        %562 = vmatpush.msra.mxu0 0.0
        %563 = vmatpush.msra.mxu0 0.0
        %564 = vmatpush.msra.mxu0 0.0
        %565 = vmatpush.msra.mxu0 0.0
        %566 = vmatpush.msra.mxu0 0.0
        %567 = vmatpush.msra.mxu0 0.0
        %568 = vmatpush.msra.mxu0 0.0
        %569 = vmatpush.msra.mxu0 0.0
        %570 = vmatpush.msra.mxu0 %v540
        %571 = vmatpush.msra.mxu0 %v539
        %572 = vmatpush.msra.mxu0 %v538
        %573 = vmatpush.msra.mxu0 %v537
        %574 = vmatmul.f32.gmra.mxu0 %v547
        %v575 = vpop.f32.mrf.mxu0
        %v576 = vadd.f32 %v543, %v575
        %577 = vmatmul.f32.gmra.mxu0 %v550
        %v578 = vpop.f32.mrf.mxu0
        %v579 = vadd.f32 %v543, %v578
        %580 = vmatmul.f32.gmra.mxu0 %v553
        %v581 = vpop.f32.mrf.mxu0
        %v582 = vadd.f32 %v543, %v581
        %583 = vmatmul.f32.gmra.mxu0 %v556
        %v584 = vpop.f32.mrf.mxu0
        %v585 = vadd.f32 %v543, %v584
        %586 = vdwg.mxu0
        %v587 = vld [vmem:[#allocation2] sm:$0x1]
        %v588 = vld [vmem:[#allocation2 + $0x20] sm:$0x1]
        %590 = vset.pattern.permute.xlu0 0
        %591 = vperm.xlu0 %590, %v576
        %v592 = vpop.permute.xlu0 %591
        %595 = vset.pattern.permute.xlu0 0
        %596 = vperm.xlu0 %595, %v579
        %v597 = vpop.permute.xlu0 %596
        %600 = vset.pattern.permute.xlu0 0
        %601 = vperm.xlu0 %600, %v582
        %v602 = vpop.permute.xlu0 %601
        %605 = vset.pattern.permute.xlu0 0
        %606 = vperm.xlu0 %605, %v585
        %v607 = vpop.permute.xlu0 %606
        %v609 = vperm.slane %v587, 0
        %v610 = vperm.slane %v588, 0
        %v611 = vadd.f32 %v592, %v609
        %v612 = vadd.f32 %v597, %v609
        %v613 = vadd.f32 %v602, %v610
        %v614 = vadd.f32 %v607, %v610
        %v615 = vtanh.pop %v611
        %v616 = vtanh.pop %v612
        %v617 = vtanh.pop %v613
        %v618 = vtanh.pop %v614
        %s619 = sld [smem:[#allocation3]]
        %v620 = vstv %s619
        %v621 = vmul.f32 %v620, %v615
        %v622 = vmul.f32 %v620, %v616
        %v623 = vmul.f32 %v620, %v617
        %v624 = vmul.f32 %v620, %v618
        %v625 = vadd.f32 %v621, 0.0
        %v626 = vadd.f32 %v622, 0.0
        %v627 = vadd.f32 %v623, 0.0
        %v628 = vadd.f32 %v624, 0.0
        %v629 = vld [vmem:[#allocation2 + $0x1] sm:$0x1]
        %v630 = vld [vmem:[#allocation2 + $0x21] sm:$0x1]
        %631 = vset.pattern.permute.xlu0 1
        %632 = vperm.xlu0 %631, %v576
        %v633 = vpop.permute.xlu0 %632
        %635 = vset.pattern.permute.xlu0 1
        %636 = vperm.xlu0 %635, %v579
        %v637 = vpop.permute.xlu0 %636
        %639 = vset.pattern.permute.xlu0 1
        %640 = vperm.xlu0 %639, %v582
        %v641 = vpop.permute.xlu0 %640
        %643 = vset.pattern.permute.xlu0 1
        %644 = vperm.xlu0 %643, %v585
        %v645 = vpop.permute.xlu0 %644
        %v647 = vperm.slane %v629, 0
        %v648 = vperm.slane %v630, 0
        %v649 = vadd.f32 %v633, %v647
        %v650 = vadd.f32 %v637, %v647
        %v651 = vadd.f32 %v641, %v648
        %v652 = vadd.f32 %v645, %v648
        %v653 = vtanh.pop %v649
        %v654 = vtanh.pop %v650
        %v655 = vtanh.pop %v651
        %v656 = vtanh.pop %v652
        %s657 = sld [smem:[#allocation3 + $0x1]]
        %v658 = vstv %s657
        %v659 = vmul.f32 %v658, %v653
        %v660 = vmul.f32 %v658, %v654
        %v661 = vmul.f32 %v658, %v655
        %v662 = vmul.f32 %v658, %v656
        %v663 = vadd.f32 %v625, %v659
        %v664 = vadd.f32 %v626, %v660
        %v665 = vadd.f32 %v627, %v661
        %v666 = vadd.f32 %v628, %v662
        %v667 = vld [vmem:[#allocation2 + $0x2] sm:$0x1]
        %v668 = vld [vmem:[#allocation2 + $0x22] sm:$0x1]
        %669 = vset.pattern.permute.xlu0 2
        %670 = vperm.xlu0 %669, %v576
        %v671 = vpop.permute.xlu0 %670
        %673 = vset.pattern.permute.xlu0 2
        %674 = vperm.xlu0 %673, %v579
        %v675 = vpop.permute.xlu0 %674
        %677 = vset.pattern.permute.xlu0 2
        %678 = vperm.xlu0 %677, %v582
        %v679 = vpop.permute.xlu0 %678
        %681 = vset.pattern.permute.xlu0 2
        %682 = vperm.xlu0 %681, %v585
        %v683 = vpop.permute.xlu0 %682
        %v685 = vperm.slane %v667, 0
        %v686 = vperm.slane %v668, 0
        %v687 = vadd.f32 %v671, %v685
        %v688 = vadd.f32 %v675, %v685
        %v689 = vadd.f32 %v679, %v686
        %v690 = vadd.f32 %v683, %v686
        %v691 = vtanh.pop %v687
        %v692 = vtanh.pop %v688
        %v693 = vtanh.pop %v689
        %v694 = vtanh.pop %v690
        %s695 = sld [smem:[#allocation3 + $0x2]]
        %v696 = vstv %s695
        %v697 = vmul.f32 %v696, %v691
        %v698 = vmul.f32 %v696, %v692
        %v699 = vmul.f32 %v696, %v693
        %v700 = vmul.f32 %v696, %v694
        %v701 = vadd.f32 %v663, %v697
        %v702 = vadd.f32 %v664, %v698
        %v703 = vadd.f32 %v665, %v699
        %v704 = vadd.f32 %v666, %v700
        %v705 = vld [vmem:[#allocation2 + $0x3] sm:$0x1]
        %v706 = vld [vmem:[#allocation2 + $0x23] sm:$0x1]
        %707 = vset.pattern.permute.xlu0 3
        %708 = vperm.xlu0 %707, %v576
        %v709 = vpop.permute.xlu0 %708
        %711 = vset.pattern.permute.xlu0 3
        %712 = vperm.xlu0 %711, %v579
        %v713 = vpop.permute.xlu0 %712
        %715 = vset.pattern.permute.xlu0 3
        %716 = vperm.xlu0 %715, %v582
        %v717 = vpop.permute.xlu0 %716
        %719 = vset.pattern.permute.xlu0 3
        %720 = vperm.xlu0 %719, %v585
        %v721 = vpop.permute.xlu0 %720
        %v723 = vperm.slane %v705, 0
        %v724 = vperm.slane %v706, 0
        %v725 = vadd.f32 %v709, %v723
        %v726 = vadd.f32 %v713, %v723
        %v727 = vadd.f32 %v717, %v724
        %v728 = vadd.f32 %v721, %v724
        %v729 = vtanh.pop %v725
        %v730 = vtanh.pop %v726
        %v731 = vtanh.pop %v727
        %v732 = vtanh.pop %v728
        %s733 = sld [smem:[#allocation3 + $0x3]]
        %v734 = vstv %s733
        %v735 = vmul.f32 %v734, %v729
        %v736 = vmul.f32 %v734, %v730
        %v737 = vmul.f32 %v734, %v731
        %v738 = vmul.f32 %v734, %v732
        %v739 = vadd.f32 %v701, %v735
        %v740 = vadd.f32 %v702, %v736
        %v741 = vadd.f32 %v703, %v737
        %v742 = vadd.f32 %v704, %v738
        %v743 = vld [vmem:[#allocation2 + $0x4] sm:$0x1]
        %v744 = vld [vmem:[#allocation2 + $0x24] sm:$0x1]
        %745 = vset.pattern.permute.xlu0 4
        %746 = vperm.xlu0 %745, %v576
        %v747 = vpop.permute.xlu0 %746
        %749 = vset.pattern.permute.xlu0 4
        %750 = vperm.xlu0 %749, %v579
        %v751 = vpop.permute.xlu0 %750
        %753 = vset.pattern.permute.xlu0 4
        %754 = vperm.xlu0 %753, %v582
        %v755 = vpop.permute.xlu0 %754
        %757 = vset.pattern.permute.xlu0 4
        %758 = vperm.xlu0 %757, %v585
        %v759 = vpop.permute.xlu0 %758
        %v761 = vperm.slane %v743, 0
        %v762 = vperm.slane %v744, 0
        %v763 = vadd.f32 %v747, %v761
        %v764 = vadd.f32 %v751, %v761
        %v765 = vadd.f32 %v755, %v762
        %v766 = vadd.f32 %v759, %v762
        %v767 = vtanh.pop %v763
        %v768 = vtanh.pop %v764
        %v769 = vtanh.pop %v765
        %v770 = vtanh.pop %v766
        %s771 = sld [smem:[#allocation3 + $0x4]]
        %v772 = vstv %s771
        %v773 = vmul.f32 %v772, %v767
        %v774 = vmul.f32 %v772, %v768
        %v775 = vmul.f32 %v772, %v769
        %v776 = vmul.f32 %v772, %v770
        %v777 = vadd.f32 %v739, %v773
        %v778 = vadd.f32 %v740, %v774
        %v779 = vadd.f32 %v741, %v775
        %v780 = vadd.f32 %v742, %v776
        %v781 = vld [vmem:[#allocation2 + $0x5] sm:$0x1]
        %v782 = vld [vmem:[#allocation2 + $0x25] sm:$0x1]
        %783 = vset.pattern.permute.xlu0 5
        %784 = vperm.xlu0 %783, %v576
        %v785 = vpop.permute.xlu0 %784
        %787 = vset.pattern.permute.xlu0 5
        %788 = vperm.xlu0 %787, %v579
        %v789 = vpop.permute.xlu0 %788
        %791 = vset.pattern.permute.xlu0 5
        %792 = vperm.xlu0 %791, %v582
        %v793 = vpop.permute.xlu0 %792
        %795 = vset.pattern.permute.xlu0 5
        %796 = vperm.xlu0 %795, %v585
        %v797 = vpop.permute.xlu0 %796
        %v799 = vperm.slane %v781, 0
        %v800 = vperm.slane %v782, 0
        %v801 = vadd.f32 %v785, %v799
        %v802 = vadd.f32 %v789, %v799
        %v803 = vadd.f32 %v793, %v800
        %v804 = vadd.f32 %v797, %v800
        %v805 = vtanh.pop %v801
        %v806 = vtanh.pop %v802
        %v807 = vtanh.pop %v803
        %v808 = vtanh.pop %v804
        %s809 = sld [smem:[#allocation3 + $0x5]]
        %v810 = vstv %s809
        %v811 = vmul.f32 %v810, %v805
        %v812 = vmul.f32 %v810, %v806
        %v813 = vmul.f32 %v810, %v807
        %v814 = vmul.f32 %v810, %v808
        %v815 = vadd.f32 %v777, %v811
        %v816 = vadd.f32 %v778, %v812
        %v817 = vadd.f32 %v779, %v813
        %v818 = vadd.f32 %v780, %v814
        %v819 = vld [vmem:[#allocation2 + $0x6] sm:$0x1]
        %v820 = vld [vmem:[#allocation2 + $0x26] sm:$0x1]
        %821 = vset.pattern.permute.xlu0 6
        %822 = vperm.xlu0 %821, %v576
        %v823 = vpop.permute.xlu0 %822
        %825 = vset.pattern.permute.xlu0 6
        %826 = vperm.xlu0 %825, %v579
        %v827 = vpop.permute.xlu0 %826
        %829 = vset.pattern.permute.xlu0 6
        %830 = vperm.xlu0 %829, %v582
        %v831 = vpop.permute.xlu0 %830
        %833 = vset.pattern.permute.xlu0 6
        %834 = vperm.xlu0 %833, %v585
        %v835 = vpop.permute.xlu0 %834
        %v837 = vperm.slane %v819, 0
        %v838 = vperm.slane %v820, 0
        %v839 = vadd.f32 %v823, %v837
        %v840 = vadd.f32 %v827, %v837
        %v841 = vadd.f32 %v831, %v838
        %v842 = vadd.f32 %v835, %v838
        %v843 = vtanh.pop %v839
        %v844 = vtanh.pop %v840
        %v845 = vtanh.pop %v841
        %v846 = vtanh.pop %v842
        %s847 = sld [smem:[#allocation3 + $0x6]]
        %v848 = vstv %s847
        %v849 = vmul.f32 %v848, %v843
        %v850 = vmul.f32 %v848, %v844
        %v851 = vmul.f32 %v848, %v845
        %v852 = vmul.f32 %v848, %v846
        %v853 = vadd.f32 %v815, %v849
        %v854 = vadd.f32 %v816, %v850
        %v855 = vadd.f32 %v817, %v851
        %v856 = vadd.f32 %v818, %v852
        %v857 = vld [vmem:[#allocation2 + $0x7] sm:$0x1]
        %v858 = vld [vmem:[#allocation2 + $0x27] sm:$0x1]
        %859 = vset.pattern.permute.xlu0 7
        %860 = vperm.xlu0 %859, %v576
        %v861 = vpop.permute.xlu0 %860
        %863 = vset.pattern.permute.xlu0 7
        %864 = vperm.xlu0 %863, %v579
        %v865 = vpop.permute.xlu0 %864
        %867 = vset.pattern.permute.xlu0 7
        %868 = vperm.xlu0 %867, %v582
        %v869 = vpop.permute.xlu0 %868
        %871 = vset.pattern.permute.xlu0 7
        %872 = vperm.xlu0 %871, %v585
        %v873 = vpop.permute.xlu0 %872
        %v875 = vperm.slane %v857, 0
        %v876 = vperm.slane %v858, 0
        %v877 = vadd.f32 %v861, %v875
        %v878 = vadd.f32 %v865, %v875
        %v879 = vadd.f32 %v869, %v876
        %v880 = vadd.f32 %v873, %v876
        %v881 = vtanh.pop %v877
        %v882 = vtanh.pop %v878
        %v883 = vtanh.pop %v879
        %v884 = vtanh.pop %v880
        %s885 = sld [smem:[#allocation3 + $0x7]]
        %v886 = vstv %s885
        %v887 = vmul.f32 %v886, %v881
        %v888 = vmul.f32 %v886, %v882
        %v889 = vmul.f32 %v886, %v883
        %v890 = vmul.f32 %v886, %v884
        %v891 = vadd.f32 %v853, %v887
        %v892 = vadd.f32 %v854, %v888
        %v893 = vadd.f32 %v855, %v889
        %v894 = vadd.f32 %v856, %v890
        %v895 = vld [vmem:[#allocation2 + $0x8] sm:$0x1]
        %v896 = vld [vmem:[#allocation2 + $0x28] sm:$0x1]
        %897 = vset.pattern.permute.xlu0 8
        %898 = vperm.xlu0 %897, %v576
        %v899 = vpop.permute.xlu0 %898
        %901 = vset.pattern.permute.xlu0 8
        %902 = vperm.xlu0 %901, %v579
        %v903 = vpop.permute.xlu0 %902
        %905 = vset.pattern.permute.xlu0 8
        %906 = vperm.xlu0 %905, %v582
        %v907 = vpop.permute.xlu0 %906
        %909 = vset.pattern.permute.xlu0 8
        %910 = vperm.xlu0 %909, %v585
        %v911 = vpop.permute.xlu0 %910
        %v913 = vperm.slane %v895, 0
        %v914 = vperm.slane %v896, 0
        %v915 = vadd.f32 %v899, %v913
        %v916 = vadd.f32 %v903, %v913
        %v917 = vadd.f32 %v907, %v914
        %v918 = vadd.f32 %v911, %v914
        %v919 = vtanh.pop %v915
        %v920 = vtanh.pop %v916
        %v921 = vtanh.pop %v917
        %v922 = vtanh.pop %v918
        %s923 = sld [smem:[#allocation3 + $0x8]]
        %v924 = vstv %s923
        %v925 = vmul.f32 %v924, %v919
        %v926 = vmul.f32 %v924, %v920
        %v927 = vmul.f32 %v924, %v921
        %v928 = vmul.f32 %v924, %v922
        %v929 = vadd.f32 %v891, %v925
        %v930 = vadd.f32 %v892, %v926
        %v931 = vadd.f32 %v893, %v927
        %v932 = vadd.f32 %v894, %v928
        %v933 = vld [vmem:[#allocation2 + $0x9] sm:$0x1]
        %v934 = vld [vmem:[#allocation2 + $0x29] sm:$0x1]
        %935 = vset.pattern.permute.xlu0 9
        %936 = vperm.xlu0 %935, %v576
        %v937 = vpop.permute.xlu0 %936
        %939 = vset.pattern.permute.xlu0 9
        %940 = vperm.xlu0 %939, %v579
        %v941 = vpop.permute.xlu0 %940
        %943 = vset.pattern.permute.xlu0 9
        %944 = vperm.xlu0 %943, %v582
        %v945 = vpop.permute.xlu0 %944
        %947 = vset.pattern.permute.xlu0 9
        %948 = vperm.xlu0 %947, %v585
        %v949 = vpop.permute.xlu0 %948
        %v951 = vperm.slane %v933, 0
        %v952 = vperm.slane %v934, 0
        %v953 = vadd.f32 %v937, %v951
        %v954 = vadd.f32 %v941, %v951
        %v955 = vadd.f32 %v945, %v952
        %v956 = vadd.f32 %v949, %v952
        %v957 = vtanh.pop %v953
        %v958 = vtanh.pop %v954
        %v959 = vtanh.pop %v955
        %v960 = vtanh.pop %v956
        %s961 = sld [smem:[#allocation3 + $0x9]]
        %v962 = vstv %s961
        %v963 = vmul.f32 %v962, %v957
        %v964 = vmul.f32 %v962, %v958
        %v965 = vmul.f32 %v962, %v959
        %v966 = vmul.f32 %v962, %v960
        %v967 = vadd.f32 %v929, %v963
        %v968 = vadd.f32 %v930, %v964
        %v969 = vadd.f32 %v931, %v965
        %v970 = vadd.f32 %v932, %v966
        %v971 = vld [vmem:[#allocation2 + $0xa] sm:$0x1]
        %v972 = vld [vmem:[#allocation2 + $0x2a] sm:$0x1]
        %973 = vset.pattern.permute.xlu0 10
        %974 = vperm.xlu0 %973, %v576
        %v975 = vpop.permute.xlu0 %974
        %977 = vset.pattern.permute.xlu0 10
        %978 = vperm.xlu0 %977, %v579
        %v979 = vpop.permute.xlu0 %978
        %981 = vset.pattern.permute.xlu0 10
        %982 = vperm.xlu0 %981, %v582
        %v983 = vpop.permute.xlu0 %982
        %985 = vset.pattern.permute.xlu0 10
        %986 = vperm.xlu0 %985, %v585
        %v987 = vpop.permute.xlu0 %986
        %v989 = vperm.slane %v971, 0
        %v990 = vperm.slane %v972, 0
        %v991 = vadd.f32 %v975, %v989
        %v992 = vadd.f32 %v979, %v989
        %v993 = vadd.f32 %v983, %v990
        %v994 = vadd.f32 %v987, %v990
        %v995 = vtanh.pop %v991
        %v996 = vtanh.pop %v992
        %v997 = vtanh.pop %v993
        %v998 = vtanh.pop %v994
        %s999 = sld [smem:[#allocation3 + $0xa]]
        %v1000 = vstv %s999
        %v1001 = vmul.f32 %v1000, %v995
        %v1002 = vmul.f32 %v1000, %v996
        %v1003 = vmul.f32 %v1000, %v997
        %v1004 = vmul.f32 %v1000, %v998
        %v1005 = vadd.f32 %v967, %v1001
        %v1006 = vadd.f32 %v968, %v1002
        %v1007 = vadd.f32 %v969, %v1003
        %v1008 = vadd.f32 %v970, %v1004
        %v1009 = vld [vmem:[#allocation2 + $0xb] sm:$0x1]
        %v1010 = vld [vmem:[#allocation2 + $0x2b] sm:$0x1]
        %1011 = vset.pattern.permute.xlu0 11
        %1012 = vperm.xlu0 %1011, %v576
        %v1013 = vpop.permute.xlu0 %1012
        %1015 = vset.pattern.permute.xlu0 11
        %1016 = vperm.xlu0 %1015, %v579
        %v1017 = vpop.permute.xlu0 %1016
        %1019 = vset.pattern.permute.xlu0 11
        %1020 = vperm.xlu0 %1019, %v582
        %v1021 = vpop.permute.xlu0 %1020
        %1023 = vset.pattern.permute.xlu0 11
        %1024 = vperm.xlu0 %1023, %v585
        %v1025 = vpop.permute.xlu0 %1024
        %v1027 = vperm.slane %v1009, 0
        %v1028 = vperm.slane %v1010, 0
        %v1029 = vadd.f32 %v1013, %v1027
        %v1030 = vadd.f32 %v1017, %v1027
        %v1031 = vadd.f32 %v1021, %v1028
        %v1032 = vadd.f32 %v1025, %v1028
        %v1033 = vtanh.pop %v1029
        %v1034 = vtanh.pop %v1030
        %v1035 = vtanh.pop %v1031
        %v1036 = vtanh.pop %v1032
        %s1037 = sld [smem:[#allocation3 + $0xb]]
        %v1038 = vstv %s1037
        %v1039 = vmul.f32 %v1038, %v1033
        %v1040 = vmul.f32 %v1038, %v1034
        %v1041 = vmul.f32 %v1038, %v1035
        %v1042 = vmul.f32 %v1038, %v1036
        %v1043 = vadd.f32 %v1005, %v1039
        %v1044 = vadd.f32 %v1006, %v1040
        %v1045 = vadd.f32 %v1007, %v1041
        %v1046 = vadd.f32 %v1008, %v1042
        %v1047 = vld [vmem:[#allocation2 + $0xc] sm:$0x1]
        %v1048 = vld [vmem:[#allocation2 + $0x2c] sm:$0x1]
        %1049 = vset.pattern.permute.xlu0 12
        %1050 = vperm.xlu0 %1049, %v576
        %v1051 = vpop.permute.xlu0 %1050
        %1053 = vset.pattern.permute.xlu0 12
        %1054 = vperm.xlu0 %1053, %v579
        %v1055 = vpop.permute.xlu0 %1054
        %1057 = vset.pattern.permute.xlu0 12
        %1058 = vperm.xlu0 %1057, %v582
        %v1059 = vpop.permute.xlu0 %1058
        %1061 = vset.pattern.permute.xlu0 12
        %1062 = vperm.xlu0 %1061, %v585
        %v1063 = vpop.permute.xlu0 %1062
        %v1065 = vperm.slane %v1047, 0
        %v1066 = vperm.slane %v1048, 0
        %v1067 = vadd.f32 %v1051, %v1065
        %v1068 = vadd.f32 %v1055, %v1065
        %v1069 = vadd.f32 %v1059, %v1066
        %v1070 = vadd.f32 %v1063, %v1066
        %v1071 = vtanh.pop %v1067
        %v1072 = vtanh.pop %v1068
        %v1073 = vtanh.pop %v1069
        %v1074 = vtanh.pop %v1070
        %s1075 = sld [smem:[#allocation3 + $0xc]]
        %v1076 = vstv %s1075
        %v1077 = vmul.f32 %v1076, %v1071
        %v1078 = vmul.f32 %v1076, %v1072
        %v1079 = vmul.f32 %v1076, %v1073
        %v1080 = vmul.f32 %v1076, %v1074
        %v1081 = vadd.f32 %v1043, %v1077
        %v1082 = vadd.f32 %v1044, %v1078
        %v1083 = vadd.f32 %v1045, %v1079
        %v1084 = vadd.f32 %v1046, %v1080
        %v1085 = vld [vmem:[#allocation2 + $0xd] sm:$0x1]
        %v1086 = vld [vmem:[#allocation2 + $0x2d] sm:$0x1]
        %1087 = vset.pattern.permute.xlu0 13
        %1088 = vperm.xlu0 %1087, %v576
        %v1089 = vpop.permute.xlu0 %1088
        %1091 = vset.pattern.permute.xlu0 13
        %1092 = vperm.xlu0 %1091, %v579
        %v1093 = vpop.permute.xlu0 %1092
        %1095 = vset.pattern.permute.xlu0 13
        %1096 = vperm.xlu0 %1095, %v582
        %v1097 = vpop.permute.xlu0 %1096
        %1099 = vset.pattern.permute.xlu0 13
        %1100 = vperm.xlu0 %1099, %v585
        %v1101 = vpop.permute.xlu0 %1100
        %v1103 = vperm.slane %v1085, 0
        %v1104 = vperm.slane %v1086, 0
        %v1105 = vadd.f32 %v1089, %v1103
        %v1106 = vadd.f32 %v1093, %v1103
        %v1107 = vadd.f32 %v1097, %v1104
        %v1108 = vadd.f32 %v1101, %v1104
        %v1109 = vtanh.pop %v1105
        %v1110 = vtanh.pop %v1106
        %v1111 = vtanh.pop %v1107
        %v1112 = vtanh.pop %v1108
        %s1113 = sld [smem:[#allocation3 + $0xd]]
        %v1114 = vstv %s1113
        %v1115 = vmul.f32 %v1114, %v1109
        %v1116 = vmul.f32 %v1114, %v1110
        %v1117 = vmul.f32 %v1114, %v1111
        %v1118 = vmul.f32 %v1114, %v1112
        %v1119 = vadd.f32 %v1081, %v1115
        %v1120 = vadd.f32 %v1082, %v1116
        %v1121 = vadd.f32 %v1083, %v1117
        %v1122 = vadd.f32 %v1084, %v1118
        %v1123 = vld [vmem:[#allocation2 + $0xe] sm:$0x1]
        %v1124 = vld [vmem:[#allocation2 + $0x2e] sm:$0x1]
        %1125 = vset.pattern.permute.xlu0 14
        %1126 = vperm.xlu0 %1125, %v576
        %v1127 = vpop.permute.xlu0 %1126
        %1129 = vset.pattern.permute.xlu0 14
        %1130 = vperm.xlu0 %1129, %v579
        %v1131 = vpop.permute.xlu0 %1130
        %1133 = vset.pattern.permute.xlu0 14
        %1134 = vperm.xlu0 %1133, %v582
        %v1135 = vpop.permute.xlu0 %1134
        %1137 = vset.pattern.permute.xlu0 14
        %1138 = vperm.xlu0 %1137, %v585
        %v1139 = vpop.permute.xlu0 %1138
        %v1141 = vperm.slane %v1123, 0
        %v1142 = vperm.slane %v1124, 0
        %v1143 = vadd.f32 %v1127, %v1141
        %v1144 = vadd.f32 %v1131, %v1141
        %v1145 = vadd.f32 %v1135, %v1142
        %v1146 = vadd.f32 %v1139, %v1142
        %v1147 = vtanh.pop %v1143
        %v1148 = vtanh.pop %v1144
        %v1149 = vtanh.pop %v1145
        %v1150 = vtanh.pop %v1146
        %s1151 = sld [smem:[#allocation3 + $0xe]]
        %v1152 = vstv %s1151
        %v1153 = vmul.f32 %v1152, %v1147
        %v1154 = vmul.f32 %v1152, %v1148
        %v1155 = vmul.f32 %v1152, %v1149
        %v1156 = vmul.f32 %v1152, %v1150
        %v1157 = vadd.f32 %v1119, %v1153
        %v1158 = vadd.f32 %v1120, %v1154
        %v1159 = vadd.f32 %v1121, %v1155
        %v1160 = vadd.f32 %v1122, %v1156
        %v1161 = vld [vmem:[#allocation2 + $0xf] sm:$0x1]
        %v1162 = vld [vmem:[#allocation2 + $0x2f] sm:$0x1]
        %1163 = vset.pattern.permute.xlu0 15
        %1164 = vperm.xlu0 %1163, %v576
        %v1165 = vpop.permute.xlu0 %1164
        %1167 = vset.pattern.permute.xlu0 15
        %1168 = vperm.xlu0 %1167, %v579
        %v1169 = vpop.permute.xlu0 %1168
        %1171 = vset.pattern.permute.xlu0 15
        %1172 = vperm.xlu0 %1171, %v582
        %v1173 = vpop.permute.xlu0 %1172
        %1175 = vset.pattern.permute.xlu0 15
        %1176 = vperm.xlu0 %1175, %v585
        %v1177 = vpop.permute.xlu0 %1176
        %v1179 = vperm.slane %v1161, 0
        %v1180 = vperm.slane %v1162, 0
        %v1181 = vadd.f32 %v1165, %v1179
        %v1182 = vadd.f32 %v1169, %v1179
        %v1183 = vadd.f32 %v1173, %v1180
        %v1184 = vadd.f32 %v1177, %v1180
        %v1185 = vtanh.pop %v1181
        %v1186 = vtanh.pop %v1182
        %v1187 = vtanh.pop %v1183
        %v1188 = vtanh.pop %v1184
        %s1189 = sld [smem:[#allocation3 + $0xf]]
        %v1190 = vstv %s1189
        %v1191 = vmul.f32 %v1190, %v1185
        %v1192 = vmul.f32 %v1190, %v1186
        %v1193 = vmul.f32 %v1190, %v1187
        %v1194 = vmul.f32 %v1190, %v1188
        %v1195 = vadd.f32 %v1157, %v1191
        %v1196 = vadd.f32 %v1158, %v1192
        %v1197 = vadd.f32 %v1159, %v1193
        %v1198 = vadd.f32 %v1160, %v1194
        %v1199 = vld [vmem:[#allocation2 + $0x10] sm:$0x1]
        %v1200 = vld [vmem:[#allocation2 + $0x30] sm:$0x1]
        %1201 = vset.pattern.permute.xlu0 16
        %1202 = vperm.xlu0 %1201, %v576
        %v1203 = vpop.permute.xlu0 %1202
        %1205 = vset.pattern.permute.xlu0 16
        %1206 = vperm.xlu0 %1205, %v579
        %v1207 = vpop.permute.xlu0 %1206
        %1209 = vset.pattern.permute.xlu0 16
        %1210 = vperm.xlu0 %1209, %v582
        %v1211 = vpop.permute.xlu0 %1210
        %1213 = vset.pattern.permute.xlu0 16
        %1214 = vperm.xlu0 %1213, %v585
        %v1215 = vpop.permute.xlu0 %1214
        %v1217 = vperm.slane %v1199, 0
        %v1218 = vperm.slane %v1200, 0
        %v1219 = vadd.f32 %v1203, %v1217
        %v1220 = vadd.f32 %v1207, %v1217
        %v1221 = vadd.f32 %v1211, %v1218
        %v1222 = vadd.f32 %v1215, %v1218
        %v1223 = vtanh.pop %v1219
        %v1224 = vtanh.pop %v1220
        %v1225 = vtanh.pop %v1221
        %v1226 = vtanh.pop %v1222
        %s1227 = sld [smem:[#allocation3 + $0x10]]
        %v1228 = vstv %s1227
        %v1229 = vmul.f32 %v1228, %v1223
        %v1230 = vmul.f32 %v1228, %v1224
        %v1231 = vmul.f32 %v1228, %v1225
        %v1232 = vmul.f32 %v1228, %v1226
        %v1233 = vadd.f32 %v1195, %v1229
        %v1234 = vadd.f32 %v1196, %v1230
        %v1235 = vadd.f32 %v1197, %v1231
        %v1236 = vadd.f32 %v1198, %v1232
        %v1237 = vld [vmem:[#allocation2 + $0x11] sm:$0x1]
        %v1238 = vld [vmem:[#allocation2 + $0x31] sm:$0x1]
        %1239 = vset.pattern.permute.xlu0 17
        %1240 = vperm.xlu0 %1239, %v576
        %v1241 = vpop.permute.xlu0 %1240
        %1243 = vset.pattern.permute.xlu0 17
        %1244 = vperm.xlu0 %1243, %v579
        %v1245 = vpop.permute.xlu0 %1244
        %1247 = vset.pattern.permute.xlu0 17
        %1248 = vperm.xlu0 %1247, %v582
        %v1249 = vpop.permute.xlu0 %1248
        %1251 = vset.pattern.permute.xlu0 17
        %1252 = vperm.xlu0 %1251, %v585
        %v1253 = vpop.permute.xlu0 %1252
        %v1255 = vperm.slane %v1237, 0
        %v1256 = vperm.slane %v1238, 0
        %v1257 = vadd.f32 %v1241, %v1255
        %v1258 = vadd.f32 %v1245, %v1255
        %v1259 = vadd.f32 %v1249, %v1256
        %v1260 = vadd.f32 %v1253, %v1256
        %v1261 = vtanh.pop %v1257
        %v1262 = vtanh.pop %v1258
        %v1263 = vtanh.pop %v1259
        %v1264 = vtanh.pop %v1260
        %s1265 = sld [smem:[#allocation3 + $0x11]]
        %v1266 = vstv %s1265
        %v1267 = vmul.f32 %v1266, %v1261
        %v1268 = vmul.f32 %v1266, %v1262
        %v1269 = vmul.f32 %v1266, %v1263
        %v1270 = vmul.f32 %v1266, %v1264
        %v1271 = vadd.f32 %v1233, %v1267
        %v1272 = vadd.f32 %v1234, %v1268
        %v1273 = vadd.f32 %v1235, %v1269
        %v1274 = vadd.f32 %v1236, %v1270
        %v1275 = vld [vmem:[#allocation2 + $0x12] sm:$0x1]
        %v1276 = vld [vmem:[#allocation2 + $0x32] sm:$0x1]
        %1277 = vset.pattern.permute.xlu0 18
        %1278 = vperm.xlu0 %1277, %v576
        %v1279 = vpop.permute.xlu0 %1278
        %1281 = vset.pattern.permute.xlu0 18
        %1282 = vperm.xlu0 %1281, %v579
        %v1283 = vpop.permute.xlu0 %1282
        %1285 = vset.pattern.permute.xlu0 18
        %1286 = vperm.xlu0 %1285, %v582
        %v1287 = vpop.permute.xlu0 %1286
        %1289 = vset.pattern.permute.xlu0 18
        %1290 = vperm.xlu0 %1289, %v585
        %v1291 = vpop.permute.xlu0 %1290
        %v1293 = vperm.slane %v1275, 0
        %v1294 = vperm.slane %v1276, 0
        %v1295 = vadd.f32 %v1279, %v1293
        %v1296 = vadd.f32 %v1283, %v1293
        %v1297 = vadd.f32 %v1287, %v1294
        %v1298 = vadd.f32 %v1291, %v1294
        %v1299 = vtanh.pop %v1295
        %v1300 = vtanh.pop %v1296
        %v1301 = vtanh.pop %v1297
        %v1302 = vtanh.pop %v1298
        %s1303 = sld [smem:[#allocation3 + $0x12]]
        %v1304 = vstv %s1303
        %v1305 = vmul.f32 %v1304, %v1299
        %v1306 = vmul.f32 %v1304, %v1300
        %v1307 = vmul.f32 %v1304, %v1301
        %v1308 = vmul.f32 %v1304, %v1302
        %v1309 = vadd.f32 %v1271, %v1305
        %v1310 = vadd.f32 %v1272, %v1306
        %v1311 = vadd.f32 %v1273, %v1307
        %v1312 = vadd.f32 %v1274, %v1308
        %v1313 = vld [vmem:[#allocation2 + $0x13] sm:$0x1]
        %v1314 = vld [vmem:[#allocation2 + $0x33] sm:$0x1]
        %1315 = vset.pattern.permute.xlu0 19
        %1316 = vperm.xlu0 %1315, %v576
        %v1317 = vpop.permute.xlu0 %1316
        %1319 = vset.pattern.permute.xlu0 19
        %1320 = vperm.xlu0 %1319, %v579
        %v1321 = vpop.permute.xlu0 %1320
        %1323 = vset.pattern.permute.xlu0 19
        %1324 = vperm.xlu0 %1323, %v582
        %v1325 = vpop.permute.xlu0 %1324
        %1327 = vset.pattern.permute.xlu0 19
        %1328 = vperm.xlu0 %1327, %v585
        %v1329 = vpop.permute.xlu0 %1328
        %v1331 = vperm.slane %v1313, 0
        %v1332 = vperm.slane %v1314, 0
        %v1333 = vadd.f32 %v1317, %v1331
        %v1334 = vadd.f32 %v1321, %v1331
        %v1335 = vadd.f32 %v1325, %v1332
        %v1336 = vadd.f32 %v1329, %v1332
        %v1337 = vtanh.pop %v1333
        %v1338 = vtanh.pop %v1334
        %v1339 = vtanh.pop %v1335
        %v1340 = vtanh.pop %v1336
        %s1341 = sld [smem:[#allocation3 + $0x13]]
        %v1342 = vstv %s1341
        %v1343 = vmul.f32 %v1342, %v1337
        %v1344 = vmul.f32 %v1342, %v1338
        %v1345 = vmul.f32 %v1342, %v1339
        %v1346 = vmul.f32 %v1342, %v1340
        %v1347 = vadd.f32 %v1309, %v1343
        %v1348 = vadd.f32 %v1310, %v1344
        %v1349 = vadd.f32 %v1311, %v1345
        %v1350 = vadd.f32 %v1312, %v1346
        %v1351 = vld [vmem:[#allocation2 + $0x14] sm:$0x1]
        %v1352 = vld [vmem:[#allocation2 + $0x34] sm:$0x1]
        %1353 = vset.pattern.permute.xlu0 20
        %1354 = vperm.xlu0 %1353, %v576
        %v1355 = vpop.permute.xlu0 %1354
        %1357 = vset.pattern.permute.xlu0 20
        %1358 = vperm.xlu0 %1357, %v579
        %v1359 = vpop.permute.xlu0 %1358
        %1361 = vset.pattern.permute.xlu0 20
        %1362 = vperm.xlu0 %1361, %v582
        %v1363 = vpop.permute.xlu0 %1362
        %1365 = vset.pattern.permute.xlu0 20
        %1366 = vperm.xlu0 %1365, %v585
        %v1367 = vpop.permute.xlu0 %1366
        %v1369 = vperm.slane %v1351, 0
        %v1370 = vperm.slane %v1352, 0
        %v1371 = vadd.f32 %v1355, %v1369
        %v1372 = vadd.f32 %v1359, %v1369
        %v1373 = vadd.f32 %v1363, %v1370
        %v1374 = vadd.f32 %v1367, %v1370
        %v1375 = vtanh.pop %v1371
        %v1376 = vtanh.pop %v1372
        %v1377 = vtanh.pop %v1373
        %v1378 = vtanh.pop %v1374
        %s1379 = sld [smem:[#allocation3 + $0x14]]
        %v1380 = vstv %s1379
        %v1381 = vmul.f32 %v1380, %v1375
        %v1382 = vmul.f32 %v1380, %v1376
        %v1383 = vmul.f32 %v1380, %v1377
        %v1384 = vmul.f32 %v1380, %v1378
        %v1385 = vadd.f32 %v1347, %v1381
        %v1386 = vadd.f32 %v1348, %v1382
        %v1387 = vadd.f32 %v1349, %v1383
        %v1388 = vadd.f32 %v1350, %v1384
        %v1389 = vld [vmem:[#allocation2 + $0x15] sm:$0x1]
        %v1390 = vld [vmem:[#allocation2 + $0x35] sm:$0x1]
        %1391 = vset.pattern.permute.xlu0 21
        %1392 = vperm.xlu0 %1391, %v576
        %v1393 = vpop.permute.xlu0 %1392
        %1395 = vset.pattern.permute.xlu0 21
        %1396 = vperm.xlu0 %1395, %v579
        %v1397 = vpop.permute.xlu0 %1396
        %1399 = vset.pattern.permute.xlu0 21
        %1400 = vperm.xlu0 %1399, %v582
        %v1401 = vpop.permute.xlu0 %1400
        %1403 = vset.pattern.permute.xlu0 21
        %1404 = vperm.xlu0 %1403, %v585
        %v1405 = vpop.permute.xlu0 %1404
        %v1407 = vperm.slane %v1389, 0
        %v1408 = vperm.slane %v1390, 0
        %v1409 = vadd.f32 %v1393, %v1407
        %v1410 = vadd.f32 %v1397, %v1407
        %v1411 = vadd.f32 %v1401, %v1408
        %v1412 = vadd.f32 %v1405, %v1408
        %v1413 = vtanh.pop %v1409
        %v1414 = vtanh.pop %v1410
        %v1415 = vtanh.pop %v1411
        %v1416 = vtanh.pop %v1412
        %s1417 = sld [smem:[#allocation3 + $0x15]]
        %v1418 = vstv %s1417
        %v1419 = vmul.f32 %v1418, %v1413
        %v1420 = vmul.f32 %v1418, %v1414
        %v1421 = vmul.f32 %v1418, %v1415
        %v1422 = vmul.f32 %v1418, %v1416
        %v1423 = vadd.f32 %v1385, %v1419
        %v1424 = vadd.f32 %v1386, %v1420
        %v1425 = vadd.f32 %v1387, %v1421
        %v1426 = vadd.f32 %v1388, %v1422
        %v1427 = vld [vmem:[#allocation2 + $0x16] sm:$0x1]
        %v1428 = vld [vmem:[#allocation2 + $0x36] sm:$0x1]
        %1429 = vset.pattern.permute.xlu0 22
        %1430 = vperm.xlu0 %1429, %v576
        %v1431 = vpop.permute.xlu0 %1430
        %1433 = vset.pattern.permute.xlu0 22
        %1434 = vperm.xlu0 %1433, %v579
        %v1435 = vpop.permute.xlu0 %1434
        %1437 = vset.pattern.permute.xlu0 22
        %1438 = vperm.xlu0 %1437, %v582
        %v1439 = vpop.permute.xlu0 %1438
        %1441 = vset.pattern.permute.xlu0 22
        %1442 = vperm.xlu0 %1441, %v585
        %v1443 = vpop.permute.xlu0 %1442
        %v1445 = vperm.slane %v1427, 0
        %v1446 = vperm.slane %v1428, 0
        %v1447 = vadd.f32 %v1431, %v1445
        %v1448 = vadd.f32 %v1435, %v1445
        %v1449 = vadd.f32 %v1439, %v1446
        %v1450 = vadd.f32 %v1443, %v1446
        %v1451 = vtanh.pop %v1447
        %v1452 = vtanh.pop %v1448
        %v1453 = vtanh.pop %v1449
        %v1454 = vtanh.pop %v1450
        %s1455 = sld [smem:[#allocation3 + $0x16]]
        %v1456 = vstv %s1455
        %v1457 = vmul.f32 %v1456, %v1451
        %v1458 = vmul.f32 %v1456, %v1452
        %v1459 = vmul.f32 %v1456, %v1453
        %v1460 = vmul.f32 %v1456, %v1454
        %v1461 = vadd.f32 %v1423, %v1457
        %v1462 = vadd.f32 %v1424, %v1458
        %v1463 = vadd.f32 %v1425, %v1459
        %v1464 = vadd.f32 %v1426, %v1460
        %v1465 = vld [vmem:[#allocation2 + $0x17] sm:$0x1]
        %v1466 = vld [vmem:[#allocation2 + $0x37] sm:$0x1]
        %1467 = vset.pattern.permute.xlu0 23
        %1468 = vperm.xlu0 %1467, %v576
        %v1469 = vpop.permute.xlu0 %1468
        %1471 = vset.pattern.permute.xlu0 23
        %1472 = vperm.xlu0 %1471, %v579
        %v1473 = vpop.permute.xlu0 %1472
        %1475 = vset.pattern.permute.xlu0 23
        %1476 = vperm.xlu0 %1475, %v582
        %v1477 = vpop.permute.xlu0 %1476
        %1479 = vset.pattern.permute.xlu0 23
        %1480 = vperm.xlu0 %1479, %v585
        %v1481 = vpop.permute.xlu0 %1480
        %v1483 = vperm.slane %v1465, 0
        %v1484 = vperm.slane %v1466, 0
        %v1485 = vadd.f32 %v1469, %v1483
        %v1486 = vadd.f32 %v1473, %v1483
        %v1487 = vadd.f32 %v1477, %v1484
        %v1488 = vadd.f32 %v1481, %v1484
        %v1489 = vtanh.pop %v1485
        %v1490 = vtanh.pop %v1486
        %v1491 = vtanh.pop %v1487
        %v1492 = vtanh.pop %v1488
        %s1493 = sld [smem:[#allocation3 + $0x17]]
        %v1494 = vstv %s1493
        %v1495 = vmul.f32 %v1494, %v1489
        %v1496 = vmul.f32 %v1494, %v1490
        %v1497 = vmul.f32 %v1494, %v1491
        %v1498 = vmul.f32 %v1494, %v1492
        %v1499 = vadd.f32 %v1461, %v1495
        %v1500 = vadd.f32 %v1462, %v1496
        %v1501 = vadd.f32 %v1463, %v1497
        %v1502 = vadd.f32 %v1464, %v1498
        %v1503 = vld [vmem:[#allocation2 + $0x18] sm:$0x1]
        %v1504 = vld [vmem:[#allocation2 + $0x38] sm:$0x1]
        %1505 = vset.pattern.permute.xlu0 24
        %1506 = vperm.xlu0 %1505, %v576
        %v1507 = vpop.permute.xlu0 %1506
        %1509 = vset.pattern.permute.xlu0 24
        %1510 = vperm.xlu0 %1509, %v579
        %v1511 = vpop.permute.xlu0 %1510
        %1513 = vset.pattern.permute.xlu0 24
        %1514 = vperm.xlu0 %1513, %v582
        %v1515 = vpop.permute.xlu0 %1514
        %1517 = vset.pattern.permute.xlu0 24
        %1518 = vperm.xlu0 %1517, %v585
        %v1519 = vpop.permute.xlu0 %1518
        %v1521 = vperm.slane %v1503, 0
        %v1522 = vperm.slane %v1504, 0
        %v1523 = vadd.f32 %v1507, %v1521
        %v1524 = vadd.f32 %v1511, %v1521
        %v1525 = vadd.f32 %v1515, %v1522
        %v1526 = vadd.f32 %v1519, %v1522
        %v1527 = vtanh.pop %v1523
        %v1528 = vtanh.pop %v1524
        %v1529 = vtanh.pop %v1525
        %v1530 = vtanh.pop %v1526
        %s1531 = sld [smem:[#allocation3 + $0x18]]
        %v1532 = vstv %s1531
        %v1533 = vmul.f32 %v1532, %v1527
        %v1534 = vmul.f32 %v1532, %v1528
        %v1535 = vmul.f32 %v1532, %v1529
        %v1536 = vmul.f32 %v1532, %v1530
        %v1537 = vadd.f32 %v1499, %v1533
        %v1538 = vadd.f32 %v1500, %v1534
        %v1539 = vadd.f32 %v1501, %v1535
        %v1540 = vadd.f32 %v1502, %v1536
        %v1541 = vld [vmem:[#allocation2 + $0x19] sm:$0x1]
        %v1542 = vld [vmem:[#allocation2 + $0x39] sm:$0x1]
        %1543 = vset.pattern.permute.xlu0 25
        %1544 = vperm.xlu0 %1543, %v576
        %v1545 = vpop.permute.xlu0 %1544
        %1547 = vset.pattern.permute.xlu0 25
        %1548 = vperm.xlu0 %1547, %v579
        %v1549 = vpop.permute.xlu0 %1548
        %1551 = vset.pattern.permute.xlu0 25
        %1552 = vperm.xlu0 %1551, %v582
        %v1553 = vpop.permute.xlu0 %1552
        %1555 = vset.pattern.permute.xlu0 25
        %1556 = vperm.xlu0 %1555, %v585
        %v1557 = vpop.permute.xlu0 %1556
        %v1559 = vperm.slane %v1541, 0
        %v1560 = vperm.slane %v1542, 0
        %v1561 = vadd.f32 %v1545, %v1559
        %v1562 = vadd.f32 %v1549, %v1559
        %v1563 = vadd.f32 %v1553, %v1560
        %v1564 = vadd.f32 %v1557, %v1560
        %v1565 = vtanh.pop %v1561
        %v1566 = vtanh.pop %v1562
        %v1567 = vtanh.pop %v1563
        %v1568 = vtanh.pop %v1564
        %s1569 = sld [smem:[#allocation3 + $0x19]]
        %v1570 = vstv %s1569
        %v1571 = vmul.f32 %v1570, %v1565
        %v1572 = vmul.f32 %v1570, %v1566
        %v1573 = vmul.f32 %v1570, %v1567
        %v1574 = vmul.f32 %v1570, %v1568
        %v1575 = vadd.f32 %v1537, %v1571
        %v1576 = vadd.f32 %v1538, %v1572
        %v1577 = vadd.f32 %v1539, %v1573
        %v1578 = vadd.f32 %v1540, %v1574
        %v1579 = vld [vmem:[#allocation2 + $0x1a] sm:$0x1]
        %v1580 = vld [vmem:[#allocation2 + $0x3a] sm:$0x1]
        %1581 = vset.pattern.permute.xlu0 26
        %1582 = vperm.xlu0 %1581, %v576
        %v1583 = vpop.permute.xlu0 %1582
        %1585 = vset.pattern.permute.xlu0 26
        %1586 = vperm.xlu0 %1585, %v579
        %v1587 = vpop.permute.xlu0 %1586
        %1589 = vset.pattern.permute.xlu0 26
        %1590 = vperm.xlu0 %1589, %v582
        %v1591 = vpop.permute.xlu0 %1590
        %1593 = vset.pattern.permute.xlu0 26
        %1594 = vperm.xlu0 %1593, %v585
        %v1595 = vpop.permute.xlu0 %1594
        %v1597 = vperm.slane %v1579, 0
        %v1598 = vperm.slane %v1580, 0
        %v1599 = vadd.f32 %v1583, %v1597
        %v1600 = vadd.f32 %v1587, %v1597
        %v1601 = vadd.f32 %v1591, %v1598
        %v1602 = vadd.f32 %v1595, %v1598
        %v1603 = vtanh.pop %v1599
        %v1604 = vtanh.pop %v1600
        %v1605 = vtanh.pop %v1601
        %v1606 = vtanh.pop %v1602
        %s1607 = sld [smem:[#allocation3 + $0x1a]]
        %v1608 = vstv %s1607
        %v1609 = vmul.f32 %v1608, %v1603
        %v1610 = vmul.f32 %v1608, %v1604
        %v1611 = vmul.f32 %v1608, %v1605
        %v1612 = vmul.f32 %v1608, %v1606
        %v1613 = vadd.f32 %v1575, %v1609
        %v1614 = vadd.f32 %v1576, %v1610
        %v1615 = vadd.f32 %v1577, %v1611
        %v1616 = vadd.f32 %v1578, %v1612
        %v1617 = vld [vmem:[#allocation2 + $0x1b] sm:$0x1]
        %v1618 = vld [vmem:[#allocation2 + $0x3b] sm:$0x1]
        %1619 = vset.pattern.permute.xlu0 27
        %1620 = vperm.xlu0 %1619, %v576
        %v1621 = vpop.permute.xlu0 %1620
        %1623 = vset.pattern.permute.xlu0 27
        %1624 = vperm.xlu0 %1623, %v579
        %v1625 = vpop.permute.xlu0 %1624
        %1627 = vset.pattern.permute.xlu0 27
        %1628 = vperm.xlu0 %1627, %v582
        %v1629 = vpop.permute.xlu0 %1628
        %1631 = vset.pattern.permute.xlu0 27
        %1632 = vperm.xlu0 %1631, %v585
        %v1633 = vpop.permute.xlu0 %1632
        %v1635 = vperm.slane %v1617, 0
        %v1636 = vperm.slane %v1618, 0
        %v1637 = vadd.f32 %v1621, %v1635
        %v1638 = vadd.f32 %v1625, %v1635
        %v1639 = vadd.f32 %v1629, %v1636
        %v1640 = vadd.f32 %v1633, %v1636
        %v1641 = vtanh.pop %v1637
        %v1642 = vtanh.pop %v1638
        %v1643 = vtanh.pop %v1639
        %v1644 = vtanh.pop %v1640
        %s1645 = sld [smem:[#allocation3 + $0x1b]]
        %v1646 = vstv %s1645
        %v1647 = vmul.f32 %v1646, %v1641
        %v1648 = vmul.f32 %v1646, %v1642
        %v1649 = vmul.f32 %v1646, %v1643
        %v1650 = vmul.f32 %v1646, %v1644
        %v1651 = vadd.f32 %v1613, %v1647
        %v1652 = vadd.f32 %v1614, %v1648
        %v1653 = vadd.f32 %v1615, %v1649
        %v1654 = vadd.f32 %v1616, %v1650
        %v1655 = vld [vmem:[#allocation2 + $0x1c] sm:$0x1]
        %v1656 = vld [vmem:[#allocation2 + $0x3c] sm:$0x1]
        %1657 = vset.pattern.permute.xlu0 28
        %1658 = vperm.xlu0 %1657, %v576
        %v1659 = vpop.permute.xlu0 %1658
        %1661 = vset.pattern.permute.xlu0 28
        %1662 = vperm.xlu0 %1661, %v579
        %v1663 = vpop.permute.xlu0 %1662
        %1665 = vset.pattern.permute.xlu0 28
        %1666 = vperm.xlu0 %1665, %v582
        %v1667 = vpop.permute.xlu0 %1666
        %1669 = vset.pattern.permute.xlu0 28
        %1670 = vperm.xlu0 %1669, %v585
        %v1671 = vpop.permute.xlu0 %1670
        %v1673 = vperm.slane %v1655, 0
        %v1674 = vperm.slane %v1656, 0
        %v1675 = vadd.f32 %v1659, %v1673
        %v1676 = vadd.f32 %v1663, %v1673
        %v1677 = vadd.f32 %v1667, %v1674
        %v1678 = vadd.f32 %v1671, %v1674
        %v1679 = vtanh.pop %v1675
        %v1680 = vtanh.pop %v1676
        %v1681 = vtanh.pop %v1677
        %v1682 = vtanh.pop %v1678
        %s1683 = sld [smem:[#allocation3 + $0x1c]]
        %v1684 = vstv %s1683
        %v1685 = vmul.f32 %v1684, %v1679
        %v1686 = vmul.f32 %v1684, %v1680
        %v1687 = vmul.f32 %v1684, %v1681
        %v1688 = vmul.f32 %v1684, %v1682
        %v1689 = vadd.f32 %v1651, %v1685
        %v1690 = vadd.f32 %v1652, %v1686
        %v1691 = vadd.f32 %v1653, %v1687
        %v1692 = vadd.f32 %v1654, %v1688
        %v1693 = vld [vmem:[#allocation2 + $0x1d] sm:$0x1]
        %v1694 = vld [vmem:[#allocation2 + $0x3d] sm:$0x1]
        %1695 = vset.pattern.permute.xlu0 29
        %1696 = vperm.xlu0 %1695, %v576
        %v1697 = vpop.permute.xlu0 %1696
        %1699 = vset.pattern.permute.xlu0 29
        %1700 = vperm.xlu0 %1699, %v579
        %v1701 = vpop.permute.xlu0 %1700
        %1703 = vset.pattern.permute.xlu0 29
        %1704 = vperm.xlu0 %1703, %v582
        %v1705 = vpop.permute.xlu0 %1704
        %1707 = vset.pattern.permute.xlu0 29
        %1708 = vperm.xlu0 %1707, %v585
        %v1709 = vpop.permute.xlu0 %1708
        %v1711 = vperm.slane %v1693, 0
        %v1712 = vperm.slane %v1694, 0
        %v1713 = vadd.f32 %v1697, %v1711
        %v1714 = vadd.f32 %v1701, %v1711
        %v1715 = vadd.f32 %v1705, %v1712
        %v1716 = vadd.f32 %v1709, %v1712
        %v1717 = vtanh.pop %v1713
        %v1718 = vtanh.pop %v1714
        %v1719 = vtanh.pop %v1715
        %v1720 = vtanh.pop %v1716
        %s1721 = sld [smem:[#allocation3 + $0x1d]]
        %v1722 = vstv %s1721
        %v1723 = vmul.f32 %v1722, %v1717
        %v1724 = vmul.f32 %v1722, %v1718
        %v1725 = vmul.f32 %v1722, %v1719
        %v1726 = vmul.f32 %v1722, %v1720
        %v1727 = vadd.f32 %v1689, %v1723
        %v1728 = vadd.f32 %v1690, %v1724
        %v1729 = vadd.f32 %v1691, %v1725
        %v1730 = vadd.f32 %v1692, %v1726
        %v1731 = vld [vmem:[#allocation2 + $0x1e] sm:$0x1]
        %v1732 = vld [vmem:[#allocation2 + $0x3e] sm:$0x1]
        %1733 = vset.pattern.permute.xlu0 30
        %1734 = vperm.xlu0 %1733, %v576
        %v1735 = vpop.permute.xlu0 %1734
        %1737 = vset.pattern.permute.xlu0 30
        %1738 = vperm.xlu0 %1737, %v579
        %v1739 = vpop.permute.xlu0 %1738
        %1741 = vset.pattern.permute.xlu0 30
        %1742 = vperm.xlu0 %1741, %v582
        %v1743 = vpop.permute.xlu0 %1742
        %1745 = vset.pattern.permute.xlu0 30
        %1746 = vperm.xlu0 %1745, %v585
        %v1747 = vpop.permute.xlu0 %1746
        %v1749 = vperm.slane %v1731, 0
        %v1750 = vperm.slane %v1732, 0
        %v1751 = vadd.f32 %v1735, %v1749
        %v1752 = vadd.f32 %v1739, %v1749
        %v1753 = vadd.f32 %v1743, %v1750
        %v1754 = vadd.f32 %v1747, %v1750
        %v1755 = vtanh.pop %v1751
        %v1756 = vtanh.pop %v1752
        %v1757 = vtanh.pop %v1753
        %v1758 = vtanh.pop %v1754
        %s1759 = sld [smem:[#allocation3 + $0x1e]]
        %v1760 = vstv %s1759
        %v1761 = vmul.f32 %v1760, %v1755
        %v1762 = vmul.f32 %v1760, %v1756
        %v1763 = vmul.f32 %v1760, %v1757
        %v1764 = vmul.f32 %v1760, %v1758
        %v1765 = vadd.f32 %v1727, %v1761
        %v1766 = vadd.f32 %v1728, %v1762
        %v1767 = vadd.f32 %v1729, %v1763
        %v1768 = vadd.f32 %v1730, %v1764
        %v1769 = vld [vmem:[#allocation2 + $0x1f] sm:$0x1]
        %v1770 = vld [vmem:[#allocation2 + $0x3f] sm:$0x1]
        %1771 = vset.pattern.permute.xlu0 31
        %1772 = vperm.xlu0 %1771, %v576
        %v1773 = vpop.permute.xlu0 %1772
        %1775 = vset.pattern.permute.xlu0 31
        %1776 = vperm.xlu0 %1775, %v579
        %v1777 = vpop.permute.xlu0 %1776
        %1779 = vset.pattern.permute.xlu0 31
        %1780 = vperm.xlu0 %1779, %v582
        %v1781 = vpop.permute.xlu0 %1780
        %1783 = vset.pattern.permute.xlu0 31
        %1784 = vperm.xlu0 %1783, %v585
        %v1785 = vpop.permute.xlu0 %1784
        %v1787 = vperm.slane %v1769, 0
        %v1788 = vperm.slane %v1770, 0
        %v1789 = vadd.f32 %v1773, %v1787
        %v1790 = vadd.f32 %v1777, %v1787
        %v1791 = vadd.f32 %v1781, %v1788
        %v1792 = vadd.f32 %v1785, %v1788
        %v1793 = vtanh.pop %v1789
        %v1794 = vtanh.pop %v1790
        %v1795 = vtanh.pop %v1791
        %v1796 = vtanh.pop %v1792
        %s1797 = sld [smem:[#allocation3 + $0x1f]]
        %v1798 = vstv %s1797
        %v1799 = vmul.f32 %v1798, %v1793
        %v1800 = vmul.f32 %v1798, %v1794
        %v1801 = vmul.f32 %v1798, %v1795
        %v1802 = vmul.f32 %v1798, %v1796
        %v1803 = vadd.f32 %v1765, %v1799
        %v1804 = vadd.f32 %v1766, %v1800
        %v1805 = vadd.f32 %v1767, %v1801
        %v1806 = vadd.f32 %v1768, %v1802
        %1807 = vmax.xlane.f32.xlu0 %v1803
        %v1808 = vpop.xlane.xlu0 %1807
        %1809 = vmax.xlane.f32.xlu0 %v1804
        %v1810 = vpop.xlane.xlu0 %1809
        %1811 = vmax.xlane.f32.xlu0 %v1805
        %v1812 = vpop.xlane.xlu0 %1811
        %1813 = vmax.xlane.f32.xlu0 %v1806
        %v1814 = vpop.xlane.xlu0 %1813
        %v1815 = vsub.f32 %v1803, %v1808
        %v1816 = vsub.f32 %v1804, %v1810
        %v1817 = vsub.f32 %v1805, %v1812
        %v1818 = vsub.f32 %v1806, %v1814
        %v1819 = vmul.f32 %v1815, 1.442695
        %v1820 = vpow.pop %v1819
        %v1821 = vmul.f32 %v1816, 1.442695
        %v1822 = vpow.pop %v1821
        %v1823 = vmul.f32 %v1817, 1.442695
        %v1824 = vpow.pop %v1823
        %v1825 = vmul.f32 %v1818, 1.442695
        %v1826 = vpow.pop %v1825
        %1827 = vadd.xlane.f32.xlu0 %v1820
        %v1828 = vpop.xlane.xlu0 %1827
        %1829 = vadd.xlane.f32.xlu0 %v1822
        %v1830 = vpop.xlane.xlu0 %1829
        %1831 = vadd.xlane.f32.xlu0 %v1824
        %v1832 = vpop.xlane.xlu0 %1831
        %1833 = vadd.xlane.f32.xlu0 %v1826
        %v1834 = vpop.xlane.xlu0 %1833
        %v1835 = vrcp.pop %v1828
        %v1836 = vmul.f32 %v1828, %v1835
        %v1837 = vsub.f32 1.0, %v1836
        %v1838 = vmul.f32 %v1835, %v1837
        %v1839 = vadd.f32 %v1835, %v1838
        %vm1840 = vweird.f32 %v1828
        %vm1841 = vweird.f32 %v1835
        %vm1842 = vmor %vm1840, %vm1841
        %v1843 = vsel %vm1842, %v1835, %v1839
        %v1844 = vand.u32 2147483647, %v1828
        %vm1845 = vcmp.eq.f32.partialorder %v1844, 8.507059e+37
        %v1846 = vand.u32 %v1828, 2147483648
        %v1847 = vor.u32 1.1754944e-38, %v1846
        %v1848 = vsel %vm1845, %v1847, %v1843
        %v1849 = vrcp.pop %v1830
        %v1850 = vmul.f32 %v1830, %v1849
        %v1851 = vsub.f32 1.0, %v1850
        %v1852 = vmul.f32 %v1849, %v1851
        %v1853 = vadd.f32 %v1849, %v1852
        %vm1854 = vweird.f32 %v1830
        %vm1855 = vweird.f32 %v1849
        %vm1856 = vmor %vm1854, %vm1855
        %v1857 = vsel %vm1856, %v1849, %v1853
        %v1858 = vand.u32 2147483647, %v1830
        %vm1859 = vcmp.eq.f32.partialorder %v1858, 8.507059e+37
        %v1860 = vand.u32 %v1830, 2147483648
        %v1861 = vor.u32 1.1754944e-38, %v1860
        %v1862 = vsel %vm1859, %v1861, %v1857
        %v1863 = vrcp.pop %v1832
        %v1864 = vmul.f32 %v1832, %v1863
        %v1865 = vsub.f32 1.0, %v1864
        %v1866 = vmul.f32 %v1863, %v1865
        %v1867 = vadd.f32 %v1863, %v1866
        %vm1868 = vweird.f32 %v1832
        %vm1869 = vweird.f32 %v1863
        %vm1870 = vmor %vm1868, %vm1869
        %v1871 = vsel %vm1870, %v1863, %v1867
        %v1872 = vand.u32 2147483647, %v1832
        %vm1873 = vcmp.eq.f32.partialorder %v1872, 8.507059e+37
        %v1874 = vand.u32 %v1832, 2147483648
        %v1875 = vor.u32 1.1754944e-38, %v1874
        %v1876 = vsel %vm1873, %v1875, %v1871
        %v1877 = vrcp.pop %v1834
        %v1878 = vmul.f32 %v1834, %v1877
        %v1879 = vsub.f32 1.0, %v1878
        %v1880 = vmul.f32 %v1877, %v1879
        %v1881 = vadd.f32 %v1877, %v1880
        %vm1882 = vweird.f32 %v1834
        %vm1883 = vweird.f32 %v1877
        %vm1884 = vmor %vm1882, %vm1883
        %v1885 = vsel %vm1884, %v1877, %v1881
        %v1886 = vand.u32 2147483647, %v1834
        %vm1887 = vcmp.eq.f32.partialorder %v1886, 8.507059e+37
        %v1888 = vand.u32 %v1834, 2147483648
        %v1889 = vor.u32 1.1754944e-38, %v1888
        %v1890 = vsel %vm1887, %v1889, %v1885
        %v1891 = vmul.f32 %v1820, %v1848
        %v1892 = vmul.f32 %v1822, %v1862
        %v1893 = vmul.f32 %v1824, %v1876
        %v1894 = vmul.f32 %v1826, %v1890
        %1895 = vst [vmem:[%s389] sm:$0xff] %v1891
        %1896 = vst [vmem:[%s389 + $0x8] sm:$0xff] %v1892
        %1897 = vst [vmem:[%s389 + $0x10] sm:$0xff] %v1893
        %1898 = vst [vmem:[%s389 + $0x18] sm:$0xff] %v1894
        %v1899 = vld [vmem:[%s407] sm:$0xff]
        %v1900 = vld [vmem:[%s407 + $0x8] sm:$0xff]
        %v1901 = vld [vmem:[%s407 + $0x10] sm:$0xff]
        %v1902 = vld [vmem:[%s407 + $0x18] sm:$0xff]
        %v1903 = vld [vmem:[%s407 + $0x20] sm:$0xff]
        %v1904 = vld [vmem:[%s407 + $0x28] sm:$0xff]
        %v1905 = vld [vmem:[%s407 + $0x30] sm:$0xff]
        %v1906 = vld [vmem:[%s407 + $0x38] sm:$0xff]
        %v1907 = vld [vmem:[%s407 + $0x40] sm:$0xff]
        %v1908 = vld [vmem:[%s407 + $0x48] sm:$0xff]
        %v1909 = vld [vmem:[%s407 + $0x50] sm:$0xff]
        %v1910 = vld [vmem:[%s407 + $0x58] sm:$0xff]
        %v1911 = vld [vmem:[%s407 + $0x60] sm:$0xff]
        %v1912 = vld [vmem:[%s407 + $0x68] sm:$0xff]
        %v1913 = vld [vmem:[%s407 + $0x70] sm:$0xff]
        %v1914 = vld [vmem:[%s407 + $0x78] sm:$0xff]
        %v1915 = vld [vmem:[%s407 + $0x80] sm:$0xff]
        %v1916 = vld [vmem:[%s407 + $0x88] sm:$0xff]
        %v1917 = vld [vmem:[%s407 + $0x90] sm:$0xff]
        %v1918 = vld [vmem:[%s407 + $0x98] sm:$0xff]
        %v1919 = vld [vmem:[%s407 + $0xa0] sm:$0xff]
        %v1920 = vld [vmem:[%s407 + $0xa8] sm:$0xff]
        %v1921 = vld [vmem:[%s407 + $0xb0] sm:$0xff]
        %v1922 = vld [vmem:[%s407 + $0xb8] sm:$0xff]
        %v1923 = vld [vmem:[%s407 + $0xc0] sm:$0xff]
        %v1924 = vld [vmem:[%s407 + $0xc8] sm:$0xff]
        %v1925 = vld [vmem:[%s407 + $0xd0] sm:$0xff]
        %v1926 = vld [vmem:[%s407 + $0xd8] sm:$0xff]
        %v1927 = vld [vmem:[%s407 + $0xe0] sm:$0xff]
        %v1928 = vld [vmem:[%s407 + $0xe8] sm:$0xff]
        %v1929 = vld [vmem:[%s407 + $0xf0] sm:$0xff]
        %v1930 = vld [vmem:[%s407 + $0xf8] sm:$0xff]
        %1931 = vmatpush.msra.mxu0 %v1914
        %1932 = vmatpush.msra.mxu0 %v1913
        %1933 = vmatpush.msra.mxu0 %v1912
        %1934 = vmatpush.msra.mxu0 %v1911
        %1935 = vmatpush.msra.mxu0 %v1910
        %1936 = vmatpush.msra.mxu0 %v1909
        %1937 = vmatpush.msra.mxu0 %v1908
        %1938 = vmatpush.msra.mxu0 %v1907
        %1939 = vmatpush.msra.mxu0 %v1906
        %1940 = vmatpush.msra.mxu0 %v1905
        %1941 = vmatpush.msra.mxu0 %v1904
        %1942 = vmatpush.msra.mxu0 %v1903
        %1943 = vmatpush.msra.mxu0 %v1902
        %1944 = vmatpush.msra.mxu0 %v1901
        %1945 = vmatpush.msra.mxu0 %v1900
        %1946 = vmatpush.msra.mxu0 %v1899
        %1947 = vmatmul.f32.gmra.mxu0 %v1891
        %v1948 = vpop.f32.mrf.mxu0
        %v1949 = vadd.f32 0.0, %v1948
        %1950 = vmatmul.f32.gmra.mxu0 %v1892
        %v1951 = vpop.f32.mrf.mxu0
        %v1952 = vadd.f32 0.0, %v1951
        %1953 = vdwg.mxu0
        %1954 = vmatpush.msra.mxu0 %v1930
        %1955 = vmatpush.msra.mxu0 %v1929
        %1956 = vmatpush.msra.mxu0 %v1928
        %1957 = vmatpush.msra.mxu0 %v1927
        %1958 = vmatpush.msra.mxu0 %v1926
        %1959 = vmatpush.msra.mxu0 %v1925
        %1960 = vmatpush.msra.mxu0 %v1924
        %1961 = vmatpush.msra.mxu0 %v1923
        %1962 = vmatpush.msra.mxu0 %v1922
        %1963 = vmatpush.msra.mxu0 %v1921
        %1964 = vmatpush.msra.mxu0 %v1920
        %1965 = vmatpush.msra.mxu0 %v1919
        %1966 = vmatpush.msra.mxu0 %v1918
        %1967 = vmatpush.msra.mxu0 %v1917
        %1968 = vmatpush.msra.mxu0 %v1916
        %1969 = vmatpush.msra.mxu0 %v1915
        %1970 = vmatmul.f32.gmra.mxu0 %v1893
        %v1971 = vpop.f32.mrf.mxu0
        %v1972 = vadd.f32 0.0, %v1971
        %1973 = vmatmul.f32.gmra.mxu0 %v1894
        %v1974 = vpop.f32.mrf.mxu0
        %v1975 = vadd.f32 0.0, %v1974
        %1976 = vdwg.mxu0
        %1977 = vst.msk [vmem:[%s382] sm:$0xff] %vm545, %v1949
        %1978 = vst.msk [vmem:[%s382 + $0x8] sm:$0xff] %vm545, %v1952
        %1979 = vst.msk [vmem:[%s382 + $0x10] sm:$0xff] %vm545, %v1972
        %1980 = vst.msk [vmem:[%s382 + $0x18] sm:$0xff] %vm545, %v1975
        %s1981 = sand.u32 %s213, 1
        %s1982 = scalar_lea.sflag [#allocation4], %s1981
        %s1983 = sand.u32 %s213, 1
        %s1984 = smul.addr %s1983, 32
        %s1985 = scalar_lea.vmem [#allocation6], %s1984
        %s1986 = sand.u32 %s241, 1
        %s1987 = scalar_lea.sflag [#allocation8], %s1986
        %s1988 = sand.u32 %s241, 1
        %s1989 = smul.addr %s1988, 32
        %s1990 = scalar_lea.vmem [#allocation7], %s1989
        // Predicated region
        $region57: #{tpu_custom_call.1} parent=47 // pred_check
          %p1991 = pneg %p223
        $region58: #{tpu_custom_call.1} parent=47 // pred_check_branch
          %1993 = sbr.rel (%p1991) target = $region60
        $region59: #{tpu_custom_call.1} parent=47 // pred_region
          %s1994 = smul.u32 2, %s31
          %s1995 = smul.u32 2, %s32
          %1997 = vsyncadd %s1982, 0
          %s1998 = smul.addr %s1994, 2
          %s1999 = sadd.s32 %s1995, %s1998
          %s2000 = smul.addr %s1999, 8
          %s2001 = scalar_lea.hbm %s7, %s2000
          %s2002 = sshll.u32 %s1985, 4
          %s2003 = int_to_ptr.vmem [resolvable:$true] %s2002
          %s2004 = sshll.u32 %s2001, 4
          %s2005 = int_to_ptr.hbm [resolvable:$true] %s2004
          %2010 = dma.vmem_to_hbm [thread:$0]  %s2003, 512, %s2005, %s1982, 128, 128, 8
        $region60: #{tpu_custom_call.1} parent=47 // pred_fallthru
          _
        // Predicated region
        $region61: #{tpu_custom_call.1} parent=47 // pred_check
          %p2011 = pneg %p251
        $region62: #{tpu_custom_call.1} parent=47 // pred_check_branch
          %2013 = sbr.rel (%p2011) target = $region64
        $region63: #{tpu_custom_call.1} parent=47 // pred_region
          %s2014 = smul.u32 2, %s31
          %s2015 = smul.u32 2, %s32
          %2017 = vsyncadd %s1987, 0
          %s2018 = smul.addr %s2014, 2
          %s2019 = sadd.s32 %s2015, %s2018
          %s2020 = smul.addr %s2019, 8
          %s2021 = scalar_lea.hbm %s8, %s2020
          %s2022 = sshll.u32 %s1990, 4
          %s2023 = int_to_ptr.vmem [resolvable:$true] %s2022
          %s2024 = sshll.u32 %s2021, 4
          %s2025 = int_to_ptr.hbm [resolvable:$true] %s2024
          %2030 = dma.vmem_to_hbm [thread:$0]  %s2023, 512, %s2025, %s1987, 128, 128, 8
        $region64: #{tpu_custom_call.1} parent=47 // pred_fallthru
          _
      $region48: #{tpu_custom_call.1} parent=5 // pred_fallthru
        _
      %p2031 = scmp.le.s32.totalorder 2, %s22
      // Predicated region
      $region65: #{tpu_custom_call.1} parent=5 // pred_check
        %p2032 = pneg %p2031
      $region66: #{tpu_custom_call.1} parent=5 // pred_check_branch
        %2034 = sbr.rel (%p2032) target = $region68
      $region67: #{tpu_custom_call.1} parent=5 // pred_region
        %s2035 = ssub.s32 %s22, 2
        // Predicated region
        $region69: #{tpu_custom_call.1} parent=67 // pred_check
          %p2036 = pneg %p229
        $region70: #{tpu_custom_call.1} parent=67 // pred_check_branch
          %2038 = sbr.rel (%p2036) target = $region72
        $region71: #{tpu_custom_call.1} parent=67 // pred_region
          %s2039 = sand.u32 %s214, 1
          %s2040 = scalar_lea.sflag [#allocation4], %s2039
          %s2041 = sand.u32 %s214, 1
          %s2042 = smul.addr %s2041, 32
          %s2043 = scalar_lea.vmem [#allocation6], %s2042
          %2045 = dma.done %s2040, 512
        $region72: #{tpu_custom_call.1} parent=67 // pred_fallthru
          _
        // Predicated region
        $region73: #{tpu_custom_call.1} parent=67 // pred_check
          %p2046 = pneg %p257
        $region74: #{tpu_custom_call.1} parent=67 // pred_check_branch
          %2048 = sbr.rel (%p2046) target = $region76
        $region75: #{tpu_custom_call.1} parent=67 // pred_region
          %s2049 = sand.u32 %s242, 1
          %s2050 = scalar_lea.sflag [#allocation8], %s2049
          %s2051 = sand.u32 %s242, 1
          %s2052 = smul.addr %s2051, 32
          %s2053 = scalar_lea.vmem [#allocation7], %s2052
          %2055 = dma.done %s2050, 512
        $region76: #{tpu_custom_call.1} parent=67 // pred_fallthru
          _
      $region68: #{tpu_custom_call.1} parent=5 // pred_fallthru
        _
    $region6: #{tpu_custom_call.1} parent=1 // loop_footer
      %s26 = sadd.s32 1, %s22
    $region7: #{tpu_custom_call.1} parent=1 // loop_footer_branch
      %21 = sbr.rel target = $region3
    $region8: #{tpu_custom_call.1} parent=1 // loop_exit
      _
    %2056 = vsyncpa [#allocation4], 1
    %s2057 = scalar_lea.sflag [#allocation4], 1
    %2058 = vsyncpa %s2057, 1
    %2059 = vsyncpa [#allocation8], 1
    %s2060 = scalar_lea.sflag [#allocation8], 1
    %2061 = vsyncpa %s2060, 1
    %2062 = vsyncpa [#allocation5], 1
    %s2063 = scalar_lea.sflag [#allocation5], 1
    %2064 = vsyncpa %s2063, 1

</llo_original>
